<compile_context>
chip_gen: v5e
topology: v5e:2x2
jax: 0.10.0
libtpu: 0.0.40
codegen_flags: <defaults>
</compile_context>

<pallas_src>
import functools
import math

import jax
import jax.numpy as jnp
from jax import lax
from jax.experimental import pallas as pl
from jax.experimental.pallas import tpu as pltpu
import numpy as np

# Matmul-input dtype.  jnp.bfloat16 roughly doubles MXU throughput and halves weight
# bytes, but exceeds the 1e-4 check against the f32 PyTorch semantics, so f32 is the
# default.  Accumulation is always f32 (preferred_element_type).
_MM_DTYPE = jnp.float32

_GELU_C = math.sqrt(2.0 / math.pi)


def _layernorm(h, w, b, eps=1e-5):
    mu = jnp.mean(h, axis=-1, keepdims=True)
    var = jnp.mean((h - mu) ** 2, axis=-1, keepdims=True)
    return (h - mu) * lax.rsqrt(var + eps) * w + b


def block_kernel(x_ref, mask_ref,
                 ln1w_ref, ln1b_ref,
                 wqkv_ref, bqkv_ref,
                 wp_ref, bp_ref,
                 ln2w_ref, ln2b_ref,
                 w1_ref, b1_ref, w2_ref, b2_ref,
                 o_ref, y_scratch, *, n_head, seq_len, batch_block):
    T = seq_len
    bb = batch_block
    C = x_ref.shape[-1]
    hd = C // n_head
    scale = 1.0 / math.sqrt(hd)

    x = x_ref[...]                                                    # (bb*T, C) f32

    # ---- ln1 + fused QKV projection (one matmul with M = bb*T, N = 3C) ----
    h = _layernorm(x, ln1w_ref[0], ln1b_ref[0])
    qkv = jnp.dot(h.astype(_MM_DTYPE), wqkv_ref[...].astype(_MM_DTYPE),
                  preferred_element_type=jnp.float32) + bqkv_ref[0]   # (bb*T, 3C)

    # Reward-mask additive bias (precomputed, grid-invariant).  Hoist the broadcast
    # out of the head loop (broadcast_in_dim is not CSE'd).
    mask_b = jnp.broadcast_to(mask_ref[...], (bb, T, T))

    # ---- attention, one head at a time (no transposes: heads are lane slices,
    # batch recovery is a free leading-dim reshape of the folded rows) ----
    for hh in range(n_head):
        qo = hh * hd
        q_h = qkv[:, qo:qo + hd].reshape(bb, T, hd)
        k_h = qkv[:, C + qo:C + qo + hd].reshape(bb, T, hd)
        v_h = qkv[:, 2 * C + qo:2 * C + qo + hd].reshape(bb, T, hd)

        att = jnp.einsum('btd,bsd->bts', q_h, k_h,
                         preferred_element_type=jnp.float32) * scale  # (bb, T, T)
        att = att + mask_b

        m = jnp.max(att, axis=-1, keepdims=True)
        e = jnp.exp(att - m)
        p = e * pl.reciprocal(jnp.sum(e, axis=-1, keepdims=True), approx=True)
        # attn_drop: identity (eval mode)

        y_h = jnp.einsum('bts,bsd->btd', p, v_h,
                         preferred_element_type=jnp.float32)          # (bb, T, hd)
        y_scratch[:, qo:qo + hd] = y_h.reshape(bb * T, hd)

    # ---- output projection + residual (single matmul on the folded rows) ----
    y = jnp.dot(y_scratch[...].astype(_MM_DTYPE), wp_ref[...].astype(_MM_DTYPE),
                preferred_element_type=jnp.float32) + bp_ref[0]
    # resid_drop: identity (eval mode)
    x1 = x + y

    # ---- ln2 + MLP (tanh-GELU runs on the EUP) ----
    h2 = _layernorm(x1, ln2w_ref[0], ln2b_ref[0])
    mid = jnp.dot(h2.astype(_MM_DTYPE), w1_ref[...].astype(_MM_DTYPE),
                  preferred_element_type=jnp.float32) + b1_ref[0]
    mid = 0.5 * mid * (1.0 + jnp.tanh(_GELU_C * (mid + 0.044715 * (mid * mid * mid))))
    out = jnp.dot(mid.astype(_MM_DTYPE), w2_ref[...].astype(_MM_DTYPE),
                  preferred_element_type=jnp.float32) + b2_ref[0]
    # mlp dropout: identity (eval mode)

    o_ref[...] = x1 + out


def block_forward(x, params, n_head, *, batch_tile=None):
    B, T, C = x.shape
    bb = B if batch_tile is None else batch_tile
    assert B % bb == 0

    # Fuse Q/K/V weights once outside the kernel (single wide MXU matmul inside).
    wqkv = jnp.concatenate([params["wq"], params["wk"], params["wv"]], axis=1)  # (C, 3C)
    bqkv = jnp.concatenate([params["bq"], params["bk"], params["bv"]], axis=1)  # (1, 3C)

    # Reward mask as an additive bias: rows with row % 3 == 0 keep only the causal
    # part, all other rows attend everywhere (reward_mask = 1 + tril; mask where == 0).
    row = jnp.arange(T)[:, None]
    col = jnp.arange(T)[None, :]
    masked = (row % 3 == 0) & (col > row)
    mask_bias = jnp.where(masked, -1e30, 0.0).astype(jnp.float32)               # (T, T)

    plist = [params["ln1_w"], params["ln1_b"], wqkv, bqkv,
             params["wp"], params["bp"], params["ln2_w"], params["ln2_b"],
             params["w1"], params["b1"], params["w2"], params["b2"]]
    param_specs = [pl.BlockSpec(p.shape, lambda i: (0, 0)) for p in plist]

    kernel = functools.partial(block_kernel, n_head=n_head, seq_len=T, batch_block=bb)

    x2 = x.reshape(B * T, C)   # fold batch into the matmul M dimension
    out2 = pl.pallas_call(
        kernel,
        out_shape=jax.ShapeDtypeStruct((B * T, C), x.dtype),
        grid_spec=pltpu.PrefetchScalarGridSpec(
            num_scalar_prefetch=0,
            grid=(B // bb,),   # 1 step for the small config; parallel axis lets larger
                               # batches shard across v7x's two TensorCores
            in_specs=[pl.BlockSpec((bb * T, C), lambda i: (i, 0)),
                      pl.BlockSpec((T, T), lambda i: (0, 0))] + param_specs,
            out_specs=pl.BlockSpec((bb * T, C), lambda i: (i, 0)),
            scratch_shapes=[pltpu.VMEM((bb * T, C), jnp.float32)],
        ),
        compiler_params=pltpu.CompilerParams(
            dimension_semantics=("parallel",),
            vmem_limit_bytes=32 * 1024 * 1024),
    )(x2, mask_bias, *plist)
    return out2.reshape(B, T, C)


def block_reference(x, params, n_head):
    """Pure-JAX reference mirroring the PyTorch forward (eval mode)."""
    B, T, C = x.shape
    hd = C // n_head

    def ln(h, w, b):
        mu = jnp.mean(h, axis=-1, keepdims=True)
        var = jnp.mean((h - mu) ** 2, axis=-1, keepdims=True)
        return (h - mu) / jnp.sqrt(var + 1e-5) * w[0] + b[0]

    h = ln(x, params["ln1_w"], params["ln1_b"])
    q = h @ params["wq"] + params["bq"][0]
    k = h @ params["wk"] + params["bk"][0]
    v = h @ params["wv"] + params["bv"][0]
    q = q.reshape(B, T, n_head, hd).transpose(0, 2, 1, 3)
    k = k.reshape(B, T, n_head, hd).transpose(0, 2, 1, 3)
    v = v.reshape(B, T, n_head, hd).transpose(0, 2, 1, 3)
    att = jnp.einsum('bhtd,bhsd->bhts', q, k) / math.sqrt(hd)
    row = jnp.arange(T)[:, None]
    col = jnp.arange(T)[None, :]
    masked = (row % 3 == 0) & (col > row)
    att = jnp.where(masked[None, None], -jnp.inf, att)
    att = jax.nn.softmax(att, axis=-1)
    y = jnp.einsum('bhts,bhsd->bhtd', att, v)
    y = y.transpose(0, 2, 1, 3).reshape(B, T, C)
    y = y @ params["wp"] + params["bp"][0]
    x1 = x + y
    h2 = ln(x1, params["ln2_w"], params["ln2_b"])
    mid = h2 @ params["w1"] + params["b1"][0]
    mid = 0.5 * mid * (1.0 + lax.erf(mid / math.sqrt(2.0)))   # exact GELU (F.gelu)
    return x1 + mid @ params["w2"] + params["b2"][0]


def init_params(key, n_embd):
    C = n_embd
    ks = jax.random.split(key, 12)
    return {
        "ln1_w": jnp.ones((1, C), jnp.float32),
        "ln1_b": jnp.zeros((1, C), jnp.float32),
        "ln2_w": jnp.ones((1, C), jnp.float32),
        "ln2_b": jnp.zeros((1, C), jnp.float32),
        "wq": 0.02 * jax.random.normal(ks[0], (C, C), jnp.float32),
        "bq": 0.01 * jax.random.normal(ks[1], (1, C), jnp.float32),
        "wk": 0.02 * jax.random.normal(ks[2], (C, C), jnp.float32),
        "bk": 0.01 * jax.random.normal(ks[3], (1, C), jnp.float32),
        "wv": 0.02 * jax.random.normal(ks[4], (C, C), jnp.float32),
        "bv": 0.01 * jax.random.normal(ks[5], (1, C), jnp.float32),
        "wp": 0.02 * jax.random.normal(ks[6], (C, C), jnp.float32),
        "bp": 0.01 * jax.random.normal(ks[7], (1, C), jnp.float32),
        "w1": 0.02 * jax.random.normal(ks[8], (C, 4 * C), jnp.float32),
        "b1": 0.01 * jax.random.normal(ks[9], (1, 4 * C), jnp.float32),
        "w2": 0.02 * jax.random.normal(ks[10], (4 * C, C), jnp.float32),
        "b2": 0.01 * jax.random.normal(ks[11], (1, C), jnp.float32),
    }


if __name__ == "__main__":
    # Small config consistent with the module: n_embd=32, n_head=4, block_size=8.
    B, T, C, n_head = 2, 8, 32, 4
    key = jax.random.PRNGKey(0)
    kx, kp = jax.random.split(key)
    x = jax.random.normal(kx, (B, T, C), jnp.float32)
    params = init_params(kp, C)

    out = block_forward(x, params, n_head)
    out = jax.block_until_ready(out)

    ref = block_reference(x, params, n_head)
    np.testing.assert_allclose(np.asarray(out), np.asarray(ref), rtol=1e-4, atol=1e-4)

    print("KERNEL_OK")
</pallas_src>

<mosaic_0001>
module attributes {stable_mosaic.version = 11 : i64} {
  func.func @block_kernel(%arg0: i32, %arg1: memref<16x32xf32, #tpu.memory_space<vmem>>, %arg2: memref<8x8xf32, #tpu.memory_space<vmem>>, %arg3: memref<1x32xf32, #tpu.memory_space<vmem>>, %arg4: memref<1x32xf32, #tpu.memory_space<vmem>>, %arg5: memref<32x96xf32, #tpu.memory_space<vmem>>, %arg6: memref<1x96xf32, #tpu.memory_space<vmem>>, %arg7: memref<32x32xf32, #tpu.memory_space<vmem>>, %arg8: memref<1x32xf32, #tpu.memory_space<vmem>>, %arg9: memref<1x32xf32, #tpu.memory_space<vmem>>, %arg10: memref<1x32xf32, #tpu.memory_space<vmem>>, %arg11: memref<32x128xf32, #tpu.memory_space<vmem>>, %arg12: memref<1x128xf32, #tpu.memory_space<vmem>>, %arg13: memref<128x32xf32, #tpu.memory_space<vmem>>, %arg14: memref<1x32xf32, #tpu.memory_space<vmem>>, %arg15: memref<16x32xf32, #tpu.memory_space<vmem>>, %arg16: memref<16x32xf32, #tpu.memory_space<vmem>>) attributes {dimension_semantics = [#tpu.dimension_semantics<parallel>], iteration_bounds = array<i64: 1>, scalar_prefetch = 0 : i64, scratch_operands = 1 : i64, tpu.core_type = #tpu.core_type<tc>, window_params = [{transform_indices = @transform_0, window_bounds = array<i64: 16, 32>}, {pipeline_mode = #tpu.pipeline_mode<synchronous>, transform_indices = @transform_1, window_bounds = array<i64: 8, 8>}, {pipeline_mode = #tpu.pipeline_mode<synchronous>, transform_indices = @transform_2, window_bounds = array<i64: 1, 32>}, {pipeline_mode = #tpu.pipeline_mode<synchronous>, transform_indices = @transform_3, window_bounds = array<i64: 1, 32>}, {pipeline_mode = #tpu.pipeline_mode<synchronous>, transform_indices = @transform_4, window_bounds = array<i64: 32, 96>}, {pipeline_mode = #tpu.pipeline_mode<synchronous>, transform_indices = @transform_5, window_bounds = array<i64: 1, 96>}, {pipeline_mode = #tpu.pipeline_mode<synchronous>, transform_indices = @transform_6, window_bounds = array<i64: 32, 32>}, {pipeline_mode = #tpu.pipeline_mode<synchronous>, transform_indices = @transform_7, window_bounds = array<i64: 1, 32>}, {pipeline_mode = #tpu.pipeline_mode<synchronous>, transform_indices = @transform_8, window_bounds = array<i64: 1, 32>}, {pipeline_mode = #tpu.pipeline_mode<synchronous>, transform_indices = @transform_9, window_bounds = array<i64: 1, 32>}, {pipeline_mode = #tpu.pipeline_mode<synchronous>, transform_indices = @transform_10, window_bounds = array<i64: 32, 128>}, {pipeline_mode = #tpu.pipeline_mode<synchronous>, transform_indices = @transform_11, window_bounds = array<i64: 1, 128>}, {pipeline_mode = #tpu.pipeline_mode<synchronous>, transform_indices = @transform_12, window_bounds = array<i64: 128, 32>}, {pipeline_mode = #tpu.pipeline_mode<synchronous>, transform_indices = @transform_13, window_bounds = array<i64: 1, 32>}, {transform_indices = @transform_14, window_bounds = array<i64: 16, 32>}]} {
    %c0 = arith.constant 0 : index
    %c0_0 = arith.constant 0 : index
    %0 = vector.load %arg1[%c0, %c0_0] : memref<16x32xf32, #tpu.memory_space<vmem>>, vector<16x32xf32>
    %c0_1 = arith.constant 0 : index
    %c0_2 = arith.constant 0 : index
    %1 = vector.load %arg3[%c0_1, %c0_2] : memref<1x32xf32, #tpu.memory_space<vmem>>, vector<1x32xf32>
    %2 = vector.shape_cast %1 : vector<1x32xf32> to vector<32xf32>
    %c0_3 = arith.constant 0 : index
    %c0_4 = arith.constant 0 : index
    %3 = vector.load %arg4[%c0_3, %c0_4] : memref<1x32xf32, #tpu.memory_space<vmem>>, vector<1x32xf32>
    %4 = vector.shape_cast %3 : vector<1x32xf32> to vector<32xf32>
    %cst = arith.constant dense<0.000000e+00> : vector<16xf32>
    %5 = vector.multi_reduction <add>, %0, %cst [1] : vector<16x32xf32> to vector<16xf32>
    %6 = vector.shape_cast %5 : vector<16xf32> to vector<16x1xf32>
    %cst_5 = arith.constant 3.200000e+01 : f32
    %7 = vector.broadcast %cst_5 : f32 to vector<16x1xf32>
    %8 = arith.divf %6, %7 : vector<16x1xf32>
    %9 = vector.broadcast %8 : vector<16x1xf32> to vector<16x32xf32>
    %10 = arith.subf %0, %9 : vector<16x32xf32>
    %11 = arith.mulf %10, %10 : vector<16x32xf32>
    %cst_6 = arith.constant dense<0.000000e+00> : vector<16xf32>
    %12 = vector.multi_reduction <add>, %11, %cst_6 [1] : vector<16x32xf32> to vector<16xf32>
    %13 = vector.shape_cast %12 : vector<16xf32> to vector<16x1xf32>
    %cst_7 = arith.constant 3.200000e+01 : f32
    %14 = vector.broadcast %cst_7 : f32 to vector<16x1xf32>
    %15 = arith.divf %13, %14 : vector<16x1xf32>
    %16 = vector.broadcast %8 : vector<16x1xf32> to vector<16x32xf32>
    %17 = arith.subf %0, %16 : vector<16x32xf32>
    %cst_8 = arith.constant 9.99999974E-6 : f32
    %18 = vector.broadcast %cst_8 : f32 to vector<16x1xf32>
    %19 = arith.addf %15, %18 : vector<16x1xf32>
    %20 = math.rsqrt %19 : vector<16x1xf32>
    %21 = vector.broadcast %20 : vector<16x1xf32> to vector<16x32xf32>
    %22 = arith.mulf %17, %21 : vector<16x32xf32>
    %23 = vector.shape_cast %2 : vector<32xf32> to vector<1x32xf32>
    %24 = vector.broadcast %23 : vector<1x32xf32> to vector<16x32xf32>
    %25 = arith.mulf %22, %24 : vector<16x32xf32>
    %26 = vector.shape_cast %4 : vector<32xf32> to vector<1x32xf32>
    %27 = vector.broadcast %26 : vector<1x32xf32> to vector<16x32xf32>
    %28 = arith.addf %25, %27 : vector<16x32xf32>
    %c0_9 = arith.constant 0 : index
    %c0_10 = arith.constant 0 : index
    %29 = vector.load %arg5[%c0_9, %c0_10] : memref<32x96xf32, #tpu.memory_space<vmem>>, vector<32x96xf32>
    %cst_11 = arith.constant dense<0.000000e+00> : vector<16x96xf32>
    %30 = tpu.matmul %28, %29, %cst_11 {dimension_numbers = #tpu.dot_dimension_numbers<[1], [0], [0], [1], [0, 0, 1, 1], [], []>} : vector<16x32xf32>, vector<32x96xf32>, vector<16x96xf32> -> vector<16x96xf32>
    %c0_12 = arith.constant 0 : index
    %c0_13 = arith.constant 0 : index
    %31 = vector.load %arg6[%c0_12, %c0_13] : memref<1x96xf32, #tpu.memory_space<vmem>>, vector<1x96xf32>
    %32 = vector.shape_cast %31 : vector<1x96xf32> to vector<96xf32>
    %33 = vector.shape_cast %32 : vector<96xf32> to vector<1x96xf32>
    %34 = vector.broadcast %33 : vector<1x96xf32> to vector<16x96xf32>
    %35 = arith.addf %30, %34 : vector<16x96xf32>
    %c0_14 = arith.constant 0 : index
    %c0_15 = arith.constant 0 : index
    %36 = vector.load %arg2[%c0_14, %c0_15] : memref<8x8xf32, #tpu.memory_space<vmem>>, vector<8x8xf32>
    %37 = vector.shape_cast %36 : vector<8x8xf32> to vector<1x8x8xf32>
    %38 = vector.broadcast %37 : vector<1x8x8xf32> to vector<2x8x8xf32>
    %39 = vector.extract_strided_slice %35 {offsets = [0, 0], sizes = [16, 8], strides = [1, 1]} : vector<16x96xf32> to vector<16x8xf32>
    %40 = vector.shape_cast %39 : vector<16x8xf32> to vector<2x8x8xf32>
    %41 = vector.extract_strided_slice %35 {offsets = [0, 32], sizes = [16, 8], strides = [1, 1]} : vector<16x96xf32> to vector<16x8xf32>
    %42 = vector.shape_cast %41 : vector<16x8xf32> to vector<2x8x8xf32>
    %43 = vector.extract_strided_slice %35 {offsets = [0, 64], sizes = [16, 8], strides = [1, 1]} : vector<16x96xf32> to vector<16x8xf32>
    %44 = vector.shape_cast %43 : vector<16x8xf32> to vector<2x8x8xf32>
    "tpu.trace_start"() <{level = 10 : i32, message = "btd,bsd->bts"}> : () -> ()
    %cst_16 = arith.constant dense<0.000000e+00> : vector<2x8x8xf32>
    %45 = tpu.matmul %40, %42, %cst_16 {dimension_numbers = #tpu.dot_dimension_numbers<[2], [2], [1], [1], [0, 0, 0, 1, 1, 1], [0], [0]>} : vector<2x8x8xf32>, vector<2x8x8xf32>, vector<2x8x8xf32> -> vector<2x8x8xf32>
    "tpu.trace_stop"() : () -> ()
    %cst_17 = arith.constant 0.353553385 : f32
    %46 = vector.broadcast %cst_17 : f32 to vector<2x8x8xf32>
    %47 = arith.mulf %45, %46 : vector<2x8x8xf32>
    %48 = arith.addf %47, %38 : vector<2x8x8xf32>
    %cst_18 = arith.constant dense<0xFF800000> : vector<2x8xf32>
    %49 = vector.multi_reduction <maximumf>, %48, %cst_18 [2] : vector<2x8x8xf32> to vector<2x8xf32>
    %50 = vector.shape_cast %49 : vector<2x8xf32> to vector<2x8x1xf32>
    %51 = vector.broadcast %50 : vector<2x8x1xf32> to vector<2x8x8xf32>
    %52 = arith.subf %48, %51 : vector<2x8x8xf32>
    %53 = math.exp %52 : vector<2x8x8xf32>
    %cst_19 = arith.constant dense<0.000000e+00> : vector<2x8xf32>
    %54 = vector.multi_reduction <add>, %53, %cst_19 [2] : vector<2x8x8xf32> to vector<2x8xf32>
    %55 = vector.shape_cast %54 : vector<2x8xf32> to vector<2x8x1xf32>
    %56 = tpu.reciprocal %55 {approx = true} : vector<2x8x1xf32> -> vector<2x8x1xf32>
    %57 = vector.broadcast %56 : vector<2x8x1xf32> to vector<2x8x8xf32>
    %58 = arith.mulf %53, %57 : vector<2x8x8xf32>
    "tpu.trace_start"() <{level = 10 : i32, message = "bts,bsd->btd"}> : () -> ()
    %cst_20 = arith.constant dense<0.000000e+00> : vector<2x8x8xf32>
    %59 = tpu.matmul %58, %44, %cst_20 {dimension_numbers = #tpu.dot_dimension_numbers<[2], [1], [1], [2], [0, 0, 0, 1, 1, 2], [0], [0]>} : vector<2x8x8xf32>, vector<2x8x8xf32>, vector<2x8x8xf32> -> vector<2x8x8xf32>
    "tpu.trace_stop"() : () -> ()
    %60 = vector.shape_cast %59 : vector<2x8x8xf32> to vector<16x8xf32>
    %c0_21 = arith.constant 0 : index
    %c0_22 = arith.constant 0 : index
    %61 = vector.load %arg16[%c0_21, %c0_22] : memref<16x32xf32, #tpu.memory_space<vmem>>, vector<16x8xf32>
    tpu.vector_store %arg16[%c0_21, %c0_22], %60 {strides = array<i32>} : memref<16x32xf32, #tpu.memory_space<vmem>>, vector<16x8xf32>,
    %62 = vector.extract_strided_slice %35 {offsets = [0, 8], sizes = [16, 8], strides = [1, 1]} : vector<16x96xf32> to vector<16x8xf32>
    %63 = vector.shape_cast %62 : vector<16x8xf32> to vector<2x8x8xf32>
    %64 = vector.extract_strided_slice %35 {offsets = [0, 40], sizes = [16, 8], strides = [1, 1]} : vector<16x96xf32> to vector<16x8xf32>
    %65 = vector.shape_cast %64 : vector<16x8xf32> to vector<2x8x8xf32>
    %66 = vector.extract_strided_slice %35 {offsets = [0, 72], sizes = [16, 8], strides = [1, 1]} : vector<16x96xf32> to vector<16x8xf32>
    %67 = vector.shape_cast %66 : vector<16x8xf32> to vector<2x8x8xf32>
    "tpu.trace_start"() <{level = 10 : i32, message = "btd,bsd->bts"}> : () -> ()
    %cst_23 = arith.constant dense<0.000000e+00> : vector<2x8x8xf32>
    %68 = tpu.matmul %63, %65, %cst_23 {dimension_numbers = #tpu.dot_dimension_numbers<[2], [2], [1], [1], [0, 0, 0, 1, 1, 1], [0], [0]>} : vector<2x8x8xf32>, vector<2x8x8xf32>, vector<2x8x8xf32> -> vector<2x8x8xf32>
    "tpu.trace_stop"() : () -> ()
    %cst_24 = arith.constant 0.353553385 : f32
    %69 = vector.broadcast %cst_24 : f32 to vector<2x8x8xf32>
    %70 = arith.mulf %68, %69 : vector<2x8x8xf32>
    %71 = arith.addf %70, %38 : vector<2x8x8xf32>
    %cst_25 = arith.constant dense<0xFF800000> : vector<2x8xf32>
    %72 = vector.multi_reduction <maximumf>, %71, %cst_25 [2] : vector<2x8x8xf32> to vector<2x8xf32>
    %73 = vector.shape_cast %72 : vector<2x8xf32> to vector<2x8x1xf32>
    %74 = vector.broadcast %73 : vector<2x8x1xf32> to vector<2x8x8xf32>
    %75 = arith.subf %71, %74 : vector<2x8x8xf32>
    %76 = math.exp %75 : vector<2x8x8xf32>
    %cst_26 = arith.constant dense<0.000000e+00> : vector<2x8xf32>
    %77 = vector.multi_reduction <add>, %76, %cst_26 [2] : vector<2x8x8xf32> to vector<2x8xf32>
    %78 = vector.shape_cast %77 : vector<2x8xf32> to vector<2x8x1xf32>
    %79 = tpu.reciprocal %78 {approx = true} : vector<2x8x1xf32> -> vector<2x8x1xf32>
    %80 = vector.broadcast %79 : vector<2x8x1xf32> to vector<2x8x8xf32>
    %81 = arith.mulf %76, %80 : vector<2x8x8xf32>
    "tpu.trace_start"() <{level = 10 : i32, message = "bts,bsd->btd"}> : () -> ()
    %cst_27 = arith.constant dense<0.000000e+00> : vector<2x8x8xf32>
    %82 = tpu.matmul %81, %67, %cst_27 {dimension_numbers = #tpu.dot_dimension_numbers<[2], [1], [1], [2], [0, 0, 0, 1, 1, 2], [0], [0]>} : vector<2x8x8xf32>, vector<2x8x8xf32>, vector<2x8x8xf32> -> vector<2x8x8xf32>
    "tpu.trace_stop"() : () -> ()
    %83 = vector.shape_cast %82 : vector<2x8x8xf32> to vector<16x8xf32>
    %c0_28 = arith.constant 0 : index
    %c8 = arith.constant 8 : index
    %84 = vector.load %arg16[%c0_28, %c8] : memref<16x32xf32, #tpu.memory_space<vmem>>, vector<16x8xf32>
    tpu.vector_store %arg16[%c0_28, %c8], %83 {strides = array<i32>} : memref<16x32xf32, #tpu.memory_space<vmem>>, vector<16x8xf32>,
    %85 = vector.extract_strided_slice %35 {offsets = [0, 16], sizes = [16, 8], strides = [1, 1]} : vector<16x96xf32> to vector<16x8xf32>
    %86 = vector.shape_cast %85 : vector<16x8xf32> to vector<2x8x8xf32>
    %87 = vector.extract_strided_slice %35 {offsets = [0, 48], sizes = [16, 8], strides = [1, 1]} : vector<16x96xf32> to vector<16x8xf32>
    %88 = vector.shape_cast %87 : vector<16x8xf32> to vector<2x8x8xf32>
    %89 = vector.extract_strided_slice %35 {offsets = [0, 80], sizes = [16, 8], strides = [1, 1]} : vector<16x96xf32> to vector<16x8xf32>
    %90 = vector.shape_cast %89 : vector<16x8xf32> to vector<2x8x8xf32>
    "tpu.trace_start"() <{level = 10 : i32, message = "btd,bsd->bts"}> : () -> ()
    %cst_29 = arith.constant dense<0.000000e+00> : vector<2x8x8xf32>
    %91 = tpu.matmul %86, %88, %cst_29 {dimension_numbers = #tpu.dot_dimension_numbers<[2], [2], [1], [1], [0, 0, 0, 1, 1, 1], [0], [0]>} : vector<2x8x8xf32>, vector<2x8x8xf32>, vector<2x8x8xf32> -> vector<2x8x8xf32>
    "tpu.trace_stop"() : () -> ()
    %cst_30 = arith.constant 0.353553385 : f32
    %92 = vector.broadcast %cst_30 : f32 to vector<2x8x8xf32>
    %93 = arith.mulf %91, %92 : vector<2x8x8xf32>
    %94 = arith.addf %93, %38 : vector<2x8x8xf32>
    %cst_31 = arith.constant dense<0xFF800000> : vector<2x8xf32>
    %95 = vector.multi_reduction <maximumf>, %94, %cst_31 [2] : vector<2x8x8xf32> to vector<2x8xf32>
    %96 = vector.shape_cast %95 : vector<2x8xf32> to vector<2x8x1xf32>
    %97 = vector.broadcast %96 : vector<2x8x1xf32> to vector<2x8x8xf32>
    %98 = arith.subf %94, %97 : vector<2x8x8xf32>
    %99 = math.exp %98 : vector<2x8x8xf32>
    %cst_32 = arith.constant dense<0.000000e+00> : vector<2x8xf32>
    %100 = vector.multi_reduction <add>, %99, %cst_32 [2] : vector<2x8x8xf32> to vector<2x8xf32>
    %101 = vector.shape_cast %100 : vector<2x8xf32> to vector<2x8x1xf32>
    %102 = tpu.reciprocal %101 {approx = true} : vector<2x8x1xf32> -> vector<2x8x1xf32>
    %103 = vector.broadcast %102 : vector<2x8x1xf32> to vector<2x8x8xf32>
    %104 = arith.mulf %99, %103 : vector<2x8x8xf32>
    "tpu.trace_start"() <{level = 10 : i32, message = "bts,bsd->btd"}> : () -> ()
    %cst_33 = arith.constant dense<0.000000e+00> : vector<2x8x8xf32>
    %105 = tpu.matmul %104, %90, %cst_33 {dimension_numbers = #tpu.dot_dimension_numbers<[2], [1], [1], [2], [0, 0, 0, 1, 1, 2], [0], [0]>} : vector<2x8x8xf32>, vector<2x8x8xf32>, vector<2x8x8xf32> -> vector<2x8x8xf32>
    "tpu.trace_stop"() : () -> ()
    %106 = vector.shape_cast %105 : vector<2x8x8xf32> to vector<16x8xf32>
    %c0_34 = arith.constant 0 : index
    %c16 = arith.constant 16 : index
    %107 = vector.load %arg16[%c0_34, %c16] : memref<16x32xf32, #tpu.memory_space<vmem>>, vector<16x8xf32>
    tpu.vector_store %arg16[%c0_34, %c16], %106 {strides = array<i32>} : memref<16x32xf32, #tpu.memory_space<vmem>>, vector<16x8xf32>,
    %108 = vector.extract_strided_slice %35 {offsets = [0, 24], sizes = [16, 8], strides = [1, 1]} : vector<16x96xf32> to vector<16x8xf32>
    %109 = vector.shape_cast %108 : vector<16x8xf32> to vector<2x8x8xf32>
    %110 = vector.extract_strided_slice %35 {offsets = [0, 56], sizes = [16, 8], strides = [1, 1]} : vector<16x96xf32> to vector<16x8xf32>
    %111 = vector.shape_cast %110 : vector<16x8xf32> to vector<2x8x8xf32>
    %112 = vector.extract_strided_slice %35 {offsets = [0, 88], sizes = [16, 8], strides = [1, 1]} : vector<16x96xf32> to vector<16x8xf32>
    %113 = vector.shape_cast %112 : vector<16x8xf32> to vector<2x8x8xf32>
    "tpu.trace_start"() <{level = 10 : i32, message = "btd,bsd->bts"}> : () -> ()
    %cst_35 = arith.constant dense<0.000000e+00> : vector<2x8x8xf32>
    %114 = tpu.matmul %109, %111, %cst_35 {dimension_numbers = #tpu.dot_dimension_numbers<[2], [2], [1], [1], [0, 0, 0, 1, 1, 1], [0], [0]>} : vector<2x8x8xf32>, vector<2x8x8xf32>, vector<2x8x8xf32> -> vector<2x8x8xf32>
    "tpu.trace_stop"() : () -> ()
    %cst_36 = arith.constant 0.353553385 : f32
    %115 = vector.broadcast %cst_36 : f32 to vector<2x8x8xf32>
    %116 = arith.mulf %114, %115 : vector<2x8x8xf32>
    %117 = arith.addf %116, %38 : vector<2x8x8xf32>
    %cst_37 = arith.constant dense<0xFF800000> : vector<2x8xf32>
    %118 = vector.multi_reduction <maximumf>, %117, %cst_37 [2] : vector<2x8x8xf32> to vector<2x8xf32>
    %119 = vector.shape_cast %118 : vector<2x8xf32> to vector<2x8x1xf32>
    %120 = vector.broadcast %119 : vector<2x8x1xf32> to vector<2x8x8xf32>
    %121 = arith.subf %117, %120 : vector<2x8x8xf32>
    %122 = math.exp %121 : vector<2x8x8xf32>
    %cst_38 = arith.constant dense<0.000000e+00> : vector<2x8xf32>
    %123 = vector.multi_reduction <add>, %122, %cst_38 [2] : vector<2x8x8xf32> to vector<2x8xf32>
    %124 = vector.shape_cast %123 : vector<2x8xf32> to vector<2x8x1xf32>
    %125 = tpu.reciprocal %124 {approx = true} : vector<2x8x1xf32> -> vector<2x8x1xf32>
    %126 = vector.broadcast %125 : vector<2x8x1xf32> to vector<2x8x8xf32>
    %127 = arith.mulf %122, %126 : vector<2x8x8xf32>
    "tpu.trace_start"() <{level = 10 : i32, message = "bts,bsd->btd"}> : () -> ()
    %cst_39 = arith.constant dense<0.000000e+00> : vector<2x8x8xf32>
    %128 = tpu.matmul %127, %113, %cst_39 {dimension_numbers = #tpu.dot_dimension_numbers<[2], [1], [1], [2], [0, 0, 0, 1, 1, 2], [0], [0]>} : vector<2x8x8xf32>, vector<2x8x8xf32>, vector<2x8x8xf32> -> vector<2x8x8xf32>
    "tpu.trace_stop"() : () -> ()
    %129 = vector.shape_cast %128 : vector<2x8x8xf32> to vector<16x8xf32>
    %c0_40 = arith.constant 0 : index
    %c24 = arith.constant 24 : index
    %130 = vector.load %arg16[%c0_40, %c24] : memref<16x32xf32, #tpu.memory_space<vmem>>, vector<16x8xf32>
    tpu.vector_store %arg16[%c0_40, %c24], %129 {strides = array<i32>} : memref<16x32xf32, #tpu.memory_space<vmem>>, vector<16x8xf32>,
    %c0_41 = arith.constant 0 : index
    %c0_42 = arith.constant 0 : index
    %131 = vector.load %arg16[%c0_41, %c0_42] : memref<16x32xf32, #tpu.memory_space<vmem>>, vector<16x32xf32>
    %c0_43 = arith.constant 0 : index
    %c0_44 = arith.constant 0 : index
    %132 = vector.load %arg7[%c0_43, %c0_44] : memref<32x32xf32, #tpu.memory_space<vmem>>, vector<32x32xf32>
    %cst_45 = arith.constant dense<0.000000e+00> : vector<16x32xf32>
    %133 = tpu.matmul %131, %132, %cst_45 {dimension_numbers = #tpu.dot_dimension_numbers<[1], [0], [0], [1], [0, 0, 1, 1], [], []>} : vector<16x32xf32>, vector<32x32xf32>, vector<16x32xf32> -> vector<16x32xf32>
    %c0_46 = arith.constant 0 : index
    %c0_47 = arith.constant 0 : index
    %134 = vector.load %arg8[%c0_46, %c0_47] : memref<1x32xf32, #tpu.memory_space<vmem>>, vector<1x32xf32>
    %135 = vector.shape_cast %134 : vector<1x32xf32> to vector<32xf32>
    %136 = vector.shape_cast %135 : vector<32xf32> to vector<1x32xf32>
    %137 = vector.broadcast %136 : vector<1x32xf32> to vector<16x32xf32>
    %138 = arith.addf %133, %137 : vector<16x32xf32>
    %139 = arith.addf %0, %138 : vector<16x32xf32>
    %c0_48 = arith.constant 0 : index
    %c0_49 = arith.constant 0 : index
    %140 = vector.load %arg9[%c0_48, %c0_49] : memref<1x32xf32, #tpu.memory_space<vmem>>, vector<1x32xf32>
    %141 = vector.shape_cast %140 : vector<1x32xf32> to vector<32xf32>
    %c0_50 = arith.constant 0 : index
    %c0_51 = arith.constant 0 : index
    %142 = vector.load %arg10[%c0_50, %c0_51] : memref<1x32xf32, #tpu.memory_space<vmem>>, vector<1x32xf32>
    %143 = vector.shape_cast %142 : vector<1x32xf32> to vector<32xf32>
    %cst_52 = arith.constant dense<0.000000e+00> : vector<16xf32>
    %144 = vector.multi_reduction <add>, %139, %cst_52 [1] : vector<16x32xf32> to vector<16xf32>
    %145 = vector.shape_cast %144 : vector<16xf32> to vector<16x1xf32>
    %cst_53 = arith.constant 3.200000e+01 : f32
    %146 = vector.broadcast %cst_53 : f32 to vector<16x1xf32>
    %147 = arith.divf %145, %146 : vector<16x1xf32>
    %148 = vector.broadcast %147 : vector<16x1xf32> to vector<16x32xf32>
    %149 = arith.subf %139, %148 : vector<16x32xf32>
    %150 = arith.mulf %149, %149 : vector<16x32xf32>
    %cst_54 = arith.constant dense<0.000000e+00> : vector<16xf32>
    %151 = vector.multi_reduction <add>, %150, %cst_54 [1] : vector<16x32xf32> to vector<16xf32>
    %152 = vector.shape_cast %151 : vector<16xf32> to vector<16x1xf32>
    %cst_55 = arith.constant 3.200000e+01 : f32
    %153 = vector.broadcast %cst_55 : f32 to vector<16x1xf32>
    %154 = arith.divf %152, %153 : vector<16x1xf32>
    %155 = vector.broadcast %147 : vector<16x1xf32> to vector<16x32xf32>
    %156 = arith.subf %139, %155 : vector<16x32xf32>
    %cst_56 = arith.constant 9.99999974E-6 : f32
    %157 = vector.broadcast %cst_56 : f32 to vector<16x1xf32>
    %158 = arith.addf %154, %157 : vector<16x1xf32>
    %159 = math.rsqrt %158 : vector<16x1xf32>
    %160 = vector.broadcast %159 : vector<16x1xf32> to vector<16x32xf32>
    %161 = arith.mulf %156, %160 : vector<16x32xf32>
    %162 = vector.shape_cast %141 : vector<32xf32> to vector<1x32xf32>
    %163 = vector.broadcast %162 : vector<1x32xf32> to vector<16x32xf32>
    %164 = arith.mulf %161, %163 : vector<16x32xf32>
    %165 = vector.shape_cast %143 : vector<32xf32> to vector<1x32xf32>
    %166 = vector.broadcast %165 : vector<1x32xf32> to vector<16x32xf32>
    %167 = arith.addf %164, %166 : vector<16x32xf32>
    %c0_57 = arith.constant 0 : index
    %c0_58 = arith.constant 0 : index
    %168 = vector.load %arg11[%c0_57, %c0_58] : memref<32x128xf32, #tpu.memory_space<vmem>>, vector<32x128xf32>
    %cst_59 = arith.constant dense<0.000000e+00> : vector<16x128xf32>
    %169 = tpu.matmul %167, %168, %cst_59 {dimension_numbers = #tpu.dot_dimension_numbers<[1], [0], [0], [1], [0, 0, 1, 1], [], []>} : vector<16x32xf32>, vector<32x128xf32>, vector<16x128xf32> -> vector<16x128xf32>
    %c0_60 = arith.constant 0 : index
    %c0_61 = arith.constant 0 : index
    %170 = vector.load %arg12[%c0_60, %c0_61] : memref<1x128xf32, #tpu.memory_space<vmem>>, vector<1x128xf32>
    %171 = vector.shape_cast %170 : vector<1x128xf32> to vector<128xf32>
    %172 = vector.shape_cast %171 : vector<128xf32> to vector<1x128xf32>
    %173 = vector.broadcast %172 : vector<1x128xf32> to vector<16x128xf32>
    %174 = arith.addf %169, %173 : vector<16x128xf32>
    %cst_62 = arith.constant 5.000000e-01 : f32
    %175 = vector.broadcast %cst_62 : f32 to vector<16x128xf32>
    %176 = arith.mulf %175, %174 : vector<16x128xf32>
    %177 = arith.mulf %174, %174 : vector<16x128xf32>
    %178 = arith.mulf %177, %174 : vector<16x128xf32>
    %cst_63 = arith.constant 4.471500e-02 : f32
    %179 = vector.broadcast %cst_63 : f32 to vector<16x128xf32>
    %180 = arith.mulf %179, %178 : vector<16x128xf32>
    %181 = arith.addf %174, %180 : vector<16x128xf32>
    %cst_64 = arith.constant 0.797884583 : f32
    %182 = vector.broadcast %cst_64 : f32 to vector<16x128xf32>
    %183 = arith.mulf %182, %181 : vector<16x128xf32>
    %184 = math.tanh %183 : vector<16x128xf32>
    %cst_65 = arith.constant 1.000000e+00 : f32
    %185 = vector.broadcast %cst_65 : f32 to vector<16x128xf32>
    %186 = arith.addf %185, %184 : vector<16x128xf32>
    %187 = arith.mulf %176, %186 : vector<16x128xf32>
    %c0_66 = arith.constant 0 : index
    %c0_67 = arith.constant 0 : index
    %188 = vector.load %arg13[%c0_66, %c0_67] : memref<128x32xf32, #tpu.memory_space<vmem>>, vector<128x32xf32>
    %cst_68 = arith.constant dense<0.000000e+00> : vector<16x32xf32>
    %189 = tpu.matmul %187, %188, %cst_68 {dimension_numbers = #tpu.dot_dimension_numbers<[1], [0], [0], [1], [0, 0, 1, 1], [], []>} : vector<16x128xf32>, vector<128x32xf32>, vector<16x32xf32> -> vector<16x32xf32>
    %c0_69 = arith.constant 0 : index
    %c0_70 = arith.constant 0 : index
    %190 = vector.load %arg14[%c0_69, %c0_70] : memref<1x32xf32, #tpu.memory_space<vmem>>, vector<1x32xf32>
    %191 = vector.shape_cast %190 : vector<1x32xf32> to vector<32xf32>
    %192 = vector.shape_cast %191 : vector<32xf32> to vector<1x32xf32>
    %193 = vector.broadcast %192 : vector<1x32xf32> to vector<16x32xf32>
    %194 = arith.addf %189, %193 : vector<16x32xf32>
    %195 = arith.addf %139, %194 : vector<16x32xf32>
    %c0_71 = arith.constant 0 : index
    %c0_72 = arith.constant 0 : index
    %196 = vector.load %arg15[%c0_71, %c0_72] : memref<16x32xf32, #tpu.memory_space<vmem>>, vector<16x32xf32>
    tpu.vector_store %arg15[%c0_71, %c0_72], %195 {strides = array<i32>} : memref<16x32xf32, #tpu.memory_space<vmem>>, vector<16x32xf32>,
    return
  }
  func.func @transform_0(%arg0: i32) -> (i32, i32) {
    %c0_i32 = arith.constant 0 : i32
    %c0_i32_0 = arith.constant 0 : i32
    return %arg0, %c0_i32 : i32, i32
  }
  func.func @transform_1(%arg0: i32) -> (i32, i32) {
    %c0_i32 = arith.constant 0 : i32
    %c0_i32_0 = arith.constant 0 : i32
    %c0_i32_1 = arith.constant 0 : i32
    return %c0_i32, %c0_i32_0 : i32, i32
  }
  func.func @transform_2(%arg0: i32) -> (i32, i32) {
    %c0_i32 = arith.constant 0 : i32
    %c0_i32_0 = arith.constant 0 : i32
    %c0_i32_1 = arith.constant 0 : i32
    return %c0_i32, %c0_i32_0 : i32, i32
  }
  func.func @transform_3(%arg0: i32) -> (i32, i32) {
    %c0_i32 = arith.constant 0 : i32
    %c0_i32_0 = arith.constant 0 : i32
    %c0_i32_1 = arith.constant 0 : i32
    return %c0_i32, %c0_i32_0 : i32, i32
  }
  func.func @transform_4(%arg0: i32) -> (i32, i32) {
    %c0_i32 = arith.constant 0 : i32
    %c0_i32_0 = arith.constant 0 : i32
    %c0_i32_1 = arith.constant 0 : i32
    return %c0_i32, %c0_i32_0 : i32, i32
  }
  func.func @transform_5(%arg0: i32) -> (i32, i32) {
    %c0_i32 = arith.constant 0 : i32
    %c0_i32_0 = arith.constant 0 : i32
    %c0_i32_1 = arith.constant 0 : i32
    return %c0_i32, %c0_i32_0 : i32, i32
  }
  func.func @transform_6(%arg0: i32) -> (i32, i32) {
    %c0_i32 = arith.constant 0 : i32
    %c0_i32_0 = arith.constant 0 : i32
    %c0_i32_1 = arith.constant 0 : i32
    return %c0_i32, %c0_i32_0 : i32, i32
  }
  func.func @transform_7(%arg0: i32) -> (i32, i32) {
    %c0_i32 = arith.constant 0 : i32
    %c0_i32_0 = arith.constant 0 : i32
    %c0_i32_1 = arith.constant 0 : i32
    return %c0_i32, %c0_i32_0 : i32, i32
  }
  func.func @transform_8(%arg0: i32) -> (i32, i32) {
    %c0_i32 = arith.constant 0 : i32
    %c0_i32_0 = arith.constant 0 : i32
    %c0_i32_1 = arith.constant 0 : i32
    return %c0_i32, %c0_i32_0 : i32, i32
  }
  func.func @transform_9(%arg0: i32) -> (i32, i32) {
    %c0_i32 = arith.constant 0 : i32
    %c0_i32_0 = arith.constant 0 : i32
    %c0_i32_1 = arith.constant 0 : i32
    return %c0_i32, %c0_i32_0 : i32, i32
  }
  func.func @transform_10(%arg0: i32) -> (i32, i32) {
    %c0_i32 = arith.constant 0 : i32
    %c0_i32_0 = arith.constant 0 : i32
    %c0_i32_1 = arith.constant 0 : i32
    return %c0_i32, %c0_i32_0 : i32, i32
  }
  func.func @transform_11(%arg0: i32) -> (i32, i32) {
    %c0_i32 = arith.constant 0 : i32
    %c0_i32_0 = arith.constant 0 : i32
    %c0_i32_1 = arith.constant 0 : i32
    return %c0_i32, %c0_i32_0 : i32, i32
  }
  func.func @transform_12(%arg0: i32) -> (i32, i32) {
    %c0_i32 = arith.constant 0 : i32
    %c0_i32_0 = arith.constant 0 : i32
    %c0_i32_1 = arith.constant 0 : i32
    return %c0_i32, %c0_i32_0 : i32, i32
  }
  func.func @transform_13(%arg0: i32) -> (i32, i32) {
    %c0_i32 = arith.constant 0 : i32
    %c0_i32_0 = arith.constant 0 : i32
    %c0_i32_1 = arith.constant 0 : i32
    return %c0_i32, %c0_i32_0 : i32, i32
  }
  func.func @transform_14(%arg0: i32) -> (i32, i32) {
    %c0_i32 = arith.constant 0 : i32
    %c0_i32_0 = arith.constant 0 : i32
    return %arg0, %c0_i32 : i32, i32
  }
}

</mosaic_0001>

<llo_original>
// kernel: tpu_custom_call.1
$region0: #{tpu_custom_call.1}
  #allocation0 [shape = 'u32[]', space=smem, size = 0x4, offset = 0x4, fixed_abs, tag = 'smem constant byte address 0x4 - core index']
  #allocation1 [shape = 'u32[72,128]{1,0:T(1,128)}', space=vmem, size = 0x9000, scoped, tag = 'internal scratch']
  #allocation2 [shape = 'f32[16,32]{1,0:T(8,128)}', space=vmem, size = 0x2000, scoped, tag = 'scratch operand']
  %s0 = inlined_call_operand.vmem [shape: f32[16,32], index: 0, kind: input, shape index: {}]
  %s1 = inlined_call_operand.vmem [shape: f32[8,8], index: 1, kind: input, shape index: {}]
  %s2 = inlined_call_operand.vmem [shape: f32[1,32], index: 2, kind: input, shape index: {}]
  %s3 = inlined_call_operand.vmem [shape: f32[1,32], index: 3, kind: input, shape index: {}]
  %s4 = inlined_call_operand.vmem [shape: f32[32,96], index: 4, kind: input, shape index: {}]
  %s5 = inlined_call_operand.vmem [shape: f32[1,96], index: 5, kind: input, shape index: {}]
  %s6 = inlined_call_operand.vmem [shape: f32[32,32], index: 6, kind: input, shape index: {}]
  %s7 = inlined_call_operand.vmem [shape: f32[1,32], index: 7, kind: input, shape index: {}]
  %s8 = inlined_call_operand.vmem [shape: f32[1,32], index: 8, kind: input, shape index: {}]
  %s9 = inlined_call_operand.vmem [shape: f32[1,32], index: 9, kind: input, shape index: {}]
  %s10 = inlined_call_operand.vmem [shape: f32[32,128], index: 10, kind: input, shape index: {}]
  %s11 = inlined_call_operand.vmem [shape: f32[1,128], index: 11, kind: input, shape index: {}]
  %s12 = inlined_call_operand.vmem [shape: f32[128,32], index: 12, kind: input, shape index: {}]
  %s13 = inlined_call_operand.vmem [shape: f32[1,32], index: 13, kind: input, shape index: {}]
  %s14 = inlined_call_operand.hbm [shape: f32[16,32], index: 14, kind: output, shape index: {}]
  %s15 = sld [smem:[#allocation0]]
  $region66: #{tpu_custom_call.1} parent=0
    _
  %s17 = ssub.s32 1, %s15
  %s18 = scalar_select 0, %s17, %s15
  $region1: #{tpu_custom_call.1} parent=0
    #allocation3 [shape = 'u8[8192]{0}', space=vmem, size = 0x2000, scoped, tag = 'output window, operand 0, single buffered']
    #allocation4 [shape = 's32[1]{0}', space=sflag, size = 0x4, scoped, tag = 'scoped memory for tpu_custom_call.1']
    %19 = vsyncpa [#allocation4], 0
    // Predicated region
    $region2: #{tpu_custom_call.1} parent=1 // pred_check
      _
    $region3: #{tpu_custom_call.1} parent=1 // pred_check_branch
      %21 = sbr.rel (0) target = $region5
    $region4: #{tpu_custom_call.1} parent=1 // pred_region
      _
    $region5: #{tpu_custom_call.1} parent=1 // pred_fallthru
      _
    // Predicated region
    $region6: #{tpu_custom_call.1} parent=1 // pred_check
      _
    $region7: #{tpu_custom_call.1} parent=1 // pred_check_branch
      %23 = sbr.rel (0) target = $region9
    $region8: #{tpu_custom_call.1} parent=1 // pred_region
      _
    $region9: #{tpu_custom_call.1} parent=1 // pred_fallthru
      _
    // Predicated region
    $region10: #{tpu_custom_call.1} parent=1 // pred_check
      _
    $region11: #{tpu_custom_call.1} parent=1 // pred_check_branch
      %25 = sbr.rel (0) target = $region13
    $region12: #{tpu_custom_call.1} parent=1 // pred_region
      _
    $region13: #{tpu_custom_call.1} parent=1 // pred_fallthru
      _
    // Predicated region
    $region14: #{tpu_custom_call.1} parent=1 // pred_check
      _
    $region15: #{tpu_custom_call.1} parent=1 // pred_check_branch
      %27 = sbr.rel (0) target = $region17
    $region16: #{tpu_custom_call.1} parent=1 // pred_region
      _
    $region17: #{tpu_custom_call.1} parent=1 // pred_fallthru
      _
    // Predicated region
    $region18: #{tpu_custom_call.1} parent=1 // pred_check
      _
    $region19: #{tpu_custom_call.1} parent=1 // pred_check_branch
      %29 = sbr.rel (0) target = $region21
    $region20: #{tpu_custom_call.1} parent=1 // pred_region
      _
    $region21: #{tpu_custom_call.1} parent=1 // pred_fallthru
      _
    // Predicated region
    $region22: #{tpu_custom_call.1} parent=1 // pred_check
      _
    $region23: #{tpu_custom_call.1} parent=1 // pred_check_branch
      %31 = sbr.rel (0) target = $region25
    $region24: #{tpu_custom_call.1} parent=1 // pred_region
      _
    $region25: #{tpu_custom_call.1} parent=1 // pred_fallthru
      _
    // Predicated region
    $region26: #{tpu_custom_call.1} parent=1 // pred_check
      _
    $region27: #{tpu_custom_call.1} parent=1 // pred_check_branch
      %33 = sbr.rel (0) target = $region29
    $region28: #{tpu_custom_call.1} parent=1 // pred_region
      _
    $region29: #{tpu_custom_call.1} parent=1 // pred_fallthru
      _
    // Predicated region
    $region30: #{tpu_custom_call.1} parent=1 // pred_check
      _
    $region31: #{tpu_custom_call.1} parent=1 // pred_check_branch
      %35 = sbr.rel (0) target = $region33
    $region32: #{tpu_custom_call.1} parent=1 // pred_region
      _
    $region33: #{tpu_custom_call.1} parent=1 // pred_fallthru
      _
    // Predicated region
    $region34: #{tpu_custom_call.1} parent=1 // pred_check
      _
    $region35: #{tpu_custom_call.1} parent=1 // pred_check_branch
      %37 = sbr.rel (0) target = $region37
    $region36: #{tpu_custom_call.1} parent=1 // pred_region
      _
    $region37: #{tpu_custom_call.1} parent=1 // pred_fallthru
      _
    // Predicated region
    $region38: #{tpu_custom_call.1} parent=1 // pred_check
      _
    $region39: #{tpu_custom_call.1} parent=1 // pred_check_branch
      %39 = sbr.rel (0) target = $region41
    $region40: #{tpu_custom_call.1} parent=1 // pred_region
      _
    $region41: #{tpu_custom_call.1} parent=1 // pred_fallthru
      _
    // Predicated region
    $region42: #{tpu_custom_call.1} parent=1 // pred_check
      _
    $region43: #{tpu_custom_call.1} parent=1 // pred_check_branch
      %41 = sbr.rel (0) target = $region45
    $region44: #{tpu_custom_call.1} parent=1 // pred_region
      _
    $region45: #{tpu_custom_call.1} parent=1 // pred_fallthru
      _
    // Predicated region
    $region46: #{tpu_custom_call.1} parent=1 // pred_check
      _
    $region47: #{tpu_custom_call.1} parent=1 // pred_check_branch
      %43 = sbr.rel (0) target = $region49
    $region48: #{tpu_custom_call.1} parent=1 // pred_region
      _
    $region49: #{tpu_custom_call.1} parent=1 // pred_fallthru
      _
    // Predicated region
    $region50: #{tpu_custom_call.1} parent=1 // pred_check
      _
    $region51: #{tpu_custom_call.1} parent=1 // pred_check_branch
      %45 = sbr.rel (0) target = $region53
    $region52: #{tpu_custom_call.1} parent=1 // pred_region
      _
    $region53: #{tpu_custom_call.1} parent=1 // pred_fallthru
      _
    // Predicated region
    $region54: #{tpu_custom_call.1} parent=1 // pred_check
      _
    $region55: #{tpu_custom_call.1} parent=1 // pred_check_branch
      %47 = sbr.rel (0) target = $region57
    $region56: #{tpu_custom_call.1} parent=1 // pred_region
      _
    $region57: #{tpu_custom_call.1} parent=1 // pred_fallthru
      _
    %v48 = vld [vmem:[%s0] sm:$0xff]
    %v49 = vld [vmem:[%s0 + $0x8] sm:$0xff]
    %v50 = vld [vmem:[%s2] sm:$0x1]
    %v51 = vld [vmem:[%s3] sm:$0x1]
    %vm52 = vcmask 261120
    %v53 = vsel %vm52, %v48, 0.0
    %54 = vadd.xlane.f32.xlu0 %v53
    %v55 = vpop.xlane.xlu0 %54
    %v56 = vsel %vm52, %v49, 0.0
    %57 = vadd.xlane.f32.xlu0 %v56
    %v58 = vpop.xlane.xlu0 %57
    %v59 = vrcp.pop 32.0
    %v60 = vmul.f32 32.0, %v59
    %v61 = vsub.f32 1.0, %v60
    %v62 = vmul.f32 %v59, %v61
    %v63 = vadd.f32 %v59, %v62
    %vm64 = vweird.f32 %v59
    %v65 = vsel %vm64, %v59, %v63
    %v66 = vmul.f32 %v55, %v65
    %v67 = vmul.f32 %v58, %v65
    %v68 = vsub.f32 %v48, %v66
    %v69 = vsub.f32 %v49, %v67
    %v70 = vmul.f32 %v68, %v68
    %v71 = vmul.f32 %v69, %v69
    %v72 = vsel %vm52, %v70, 0.0
    %73 = vadd.xlane.f32.xlu0 %v72
    %v74 = vpop.xlane.xlu0 %73
    %v75 = vsel %vm52, %v71, 0.0
    %76 = vadd.xlane.f32.xlu0 %v75
    %v77 = vpop.xlane.xlu0 %76
    %v78 = vmul.f32 %v74, %v65
    %v79 = vmul.f32 %v77, %v65
    %v80 = vadd.f32 %v78, 1e-05
    %v81 = vadd.f32 %v79, 1e-05
    %v82 = vrsqrt.pop %v80
    %v83 = vmul.f32 %v82, %v80
    %v84 = vmul.f32 %v83, %v82
    %v85 = vmul.f32 0.5, %v84
    %v86 = vsub.f32 1.5, %v85
    %v87 = vmul.f32 %v82, %v86
    %vm88 = vweird.f32 %v80
    %vm89 = vweird.f32 %v82
    %vm90 = vmor %vm88, %vm89
    %v91 = vsel %vm90, %v82, %v87
    %v92 = vrsqrt.pop %v81
    %v93 = vmul.f32 %v92, %v81
    %v94 = vmul.f32 %v93, %v92
    %v95 = vmul.f32 0.5, %v94
    %v96 = vsub.f32 1.5, %v95
    %v97 = vmul.f32 %v92, %v96
    %vm98 = vweird.f32 %v81
    %vm99 = vweird.f32 %v92
    %vm100 = vmor %vm98, %vm99
    %v101 = vsel %vm100, %v92, %v97
    %v102 = vmul.f32 %v68, %v91
    %v103 = vmul.f32 %v69, %v101
    %v105 = vperm.slane %v50, 0
    %v107 = vmul.f32 %v102, %v105
    %v108 = vmul.f32 %v103, %v105
    %v110 = vperm.slane %v51, 0
    %v112 = vadd.f32 %v107, %v110
    %v113 = vadd.f32 %v108, %v110
    %v114 = vld [vmem:[%s4] sm:$0xff]
    %v115 = vld [vmem:[%s4 + $0x8] sm:$0xff]
    %v116 = vld [vmem:[%s4 + $0x10] sm:$0xff]
    %v117 = vld [vmem:[%s4 + $0x18] sm:$0xff]
    %v118 = vld [vmem:[%s5] sm:$0x1]
    %v120 = vperm.slane %v118, 0
    %v123 = vsel %vm52, %v112, 0
    %v126 = vsel %vm52, %v113, 0
    %128 = vmatpush.msra.mxu0 0.0
    %129 = vmatpush.msra.mxu0 0.0
    %130 = vmatpush.msra.mxu0 0.0
    %131 = vmatpush.msra.mxu0 0.0
    %132 = vmatpush.msra.mxu0 0.0
    %133 = vmatpush.msra.mxu0 0.0
    %134 = vmatpush.msra.mxu0 0.0
    %135 = vmatpush.msra.mxu0 0.0
    %136 = vmatpush.msra.mxu0 0.0
    %137 = vmatpush.msra.mxu0 0.0
    %138 = vmatpush.msra.mxu0 0.0
    %139 = vmatpush.msra.mxu0 0.0
    %140 = vmatpush.msra.mxu0 %v117
    %141 = vmatpush.msra.mxu0 %v116
    %142 = vmatpush.msra.mxu0 %v115
    %143 = vmatpush.msra.mxu0 %v114
    %144 = vmatmul.f32.gmra.mxu0 %v123
    %v145 = vpop.f32.mrf.mxu0
    %v146 = vadd.f32 %v120, %v145
    %147 = vmatmul.f32.gmra.mxu0 %v126
    %v148 = vpop.f32.mrf.mxu0
    %v149 = vadd.f32 %v120, %v148
    %150 = vdwg.mxu0
    %v151 = vld [vmem:[%s1] sm:$0xff]
    %153 = vrot.lane.b32.xlu0 %v146, 96
    %v154 = vpop.permute.xlu0 %153
    %vm155 = vcmask 64512
    %v156 = vsel %vm155, %v146, 0
    %v158 = vsel %vm155, %v154, 0
    %160 = vmatpush.xpose.msra.mxu0 0.0
    %161 = vmatpush.xpose.msra.mxu0 0.0
    %162 = vmatpush.xpose.msra.mxu0 0.0
    %163 = vmatpush.xpose.msra.mxu0 0.0
    %164 = vmatpush.xpose.msra.mxu0 0.0
    %165 = vmatpush.xpose.msra.mxu0 0.0
    %166 = vmatpush.xpose.msra.mxu0 0.0
    %167 = vmatpush.xpose.msra.mxu0 0.0
    %168 = vmatpush.xpose.msra.mxu0 0.0
    %169 = vmatpush.xpose.msra.mxu0 0.0
    %170 = vmatpush.xpose.msra.mxu0 0.0
    %171 = vmatpush.xpose.msra.mxu0 0.0
    %172 = vmatpush.xpose.msra.mxu0 0.0
    %173 = vmatpush.xpose.msra.mxu0 0.0
    %174 = vmatpush.xpose.msra.mxu0 0.0
    %175 = vmatpush.xpose.msra.mxu0 %v158
    %176 = vmatmul.f32.gmra.mxu0 %v156
    %v177 = vpop.f32.mrf.mxu0
    %v178 = vadd.f32 0.0, %v177
    %179 = vdwg.mxu0
    %181 = vrot.lane.b32.xlu0 %v149, 96
    %v182 = vpop.permute.xlu0 %181
    %v183 = vsel %vm155, %v149, 0
    %v185 = vsel %vm155, %v182, 0
    %187 = vmatpush.xpose.msra.mxu0 0.0
    %188 = vmatpush.xpose.msra.mxu0 0.0
    %189 = vmatpush.xpose.msra.mxu0 0.0
    %190 = vmatpush.xpose.msra.mxu0 0.0
    %191 = vmatpush.xpose.msra.mxu0 0.0
    %192 = vmatpush.xpose.msra.mxu0 0.0
    %193 = vmatpush.xpose.msra.mxu0 0.0
    %194 = vmatpush.xpose.msra.mxu0 0.0
    %195 = vmatpush.xpose.msra.mxu0 0.0
    %196 = vmatpush.xpose.msra.mxu0 0.0
    %197 = vmatpush.xpose.msra.mxu0 0.0
    %198 = vmatpush.xpose.msra.mxu0 0.0
    %199 = vmatpush.xpose.msra.mxu0 0.0
    %200 = vmatpush.xpose.msra.mxu0 0.0
    %201 = vmatpush.xpose.msra.mxu0 0.0
    %202 = vmatpush.xpose.msra.mxu0 %v185
    %203 = vmatmul.f32.gmra.mxu0 %v183
    %v204 = vpop.f32.mrf.mxu0
    %v205 = vadd.f32 0.0, %v204
    %206 = vdwg.mxu0
    %v207 = vmul.f32 %v178, 0.35355338
    %v208 = vmul.f32 %v205, 0.35355338
    %v209 = vadd.f32 %v207, %v151
    %v210 = vadd.f32 %v208, %v151
    %v211 = vsel %vm155, %v209, -inf
    %212 = vmax.xlane.f32.xlu0 %v211
    %v213 = vpop.xlane.xlu0 %212
    %v214 = vsel %vm155, %v210, -inf
    %215 = vmax.xlane.f32.xlu0 %v214
    %v216 = vpop.xlane.xlu0 %215
    %v217 = vsub.f32 %v209, %v213
    %v218 = vsub.f32 %v210, %v216
    %v219 = vmul.f32 %v217, 1.442695
    %v220 = vpow.pop %v219
    %v221 = vmul.f32 %v218, 1.442695
    %v222 = vpow.pop %v221
    %v223 = vsel %vm155, %v220, 0.0
    %224 = vadd.xlane.f32.xlu0 %v223
    %v225 = vpop.xlane.xlu0 %224
    %v226 = vsel %vm155, %v222, 0.0
    %227 = vadd.xlane.f32.xlu0 %v226
    %v228 = vpop.xlane.xlu0 %227
    %v229 = vrcp.pop %v225
    %v230 = vrcp.pop %v228
    %v231 = vmul.f32 %v220, %v229
    %v232 = vmul.f32 %v222, %v230
    %233 = vrot.lane.b32.xlu0 %v146, 64
    %v234 = vpop.permute.xlu0 %233
    %v237 = vsel %vm155, %v231, 0
    %239 = vmatpush.msra.mxu0 0.0
    %240 = vmatpush.msra.mxu0 0.0
    %241 = vmatpush.msra.mxu0 0.0
    %242 = vmatpush.msra.mxu0 0.0
    %243 = vmatpush.msra.mxu0 0.0
    %244 = vmatpush.msra.mxu0 0.0
    %245 = vmatpush.msra.mxu0 0.0
    %246 = vmatpush.msra.mxu0 0.0
    %247 = vmatpush.msra.mxu0 0.0
    %248 = vmatpush.msra.mxu0 0.0
    %249 = vmatpush.msra.mxu0 0.0
    %250 = vmatpush.msra.mxu0 0.0
    %251 = vmatpush.msra.mxu0 0.0
    %252 = vmatpush.msra.mxu0 0.0
    %253 = vmatpush.msra.mxu0 0.0
    %254 = vmatpush.msra.mxu0 %v234
    %255 = vmatmul.f32.gmra.mxu0 %v237
    %v256 = vpop.f32.mrf.mxu0
    %v257 = vadd.f32 0.0, %v256
    %258 = vdwg.mxu0
    %259 = vrot.lane.b32.xlu0 %v149, 64
    %v260 = vpop.permute.xlu0 %259
    %v263 = vsel %vm155, %v232, 0
    %265 = vmatpush.msra.mxu0 0.0
    %266 = vmatpush.msra.mxu0 0.0
    %267 = vmatpush.msra.mxu0 0.0
    %268 = vmatpush.msra.mxu0 0.0
    %269 = vmatpush.msra.mxu0 0.0
    %270 = vmatpush.msra.mxu0 0.0
    %271 = vmatpush.msra.mxu0 0.0
    %272 = vmatpush.msra.mxu0 0.0
    %273 = vmatpush.msra.mxu0 0.0
    %274 = vmatpush.msra.mxu0 0.0
    %275 = vmatpush.msra.mxu0 0.0
    %276 = vmatpush.msra.mxu0 0.0
    %277 = vmatpush.msra.mxu0 0.0
    %278 = vmatpush.msra.mxu0 0.0
    %279 = vmatpush.msra.mxu0 0.0
    %280 = vmatpush.msra.mxu0 %v260
    %281 = vmatmul.f32.gmra.mxu0 %v263
    %v282 = vpop.f32.mrf.mxu0
    %v283 = vadd.f32 0.0, %v282
    %284 = vdwg.mxu0
    %285 = vst.msk [vmem:[#allocation2] sm:$0xff] %vm155, %v257
    %286 = vst.msk [vmem:[#allocation2 + $0x8] sm:$0xff] %vm155, %v283
    %287 = vrot.lane.b32.xlu0 %v146, 120
    %v288 = vpop.permute.xlu0 %287
    %289 = vrot.lane.b32.xlu0 %v146, 88
    %v290 = vpop.permute.xlu0 %289
    %v291 = vsel %vm155, %v288, 0
    %v293 = vsel %vm155, %v290, 0
    %295 = vmatpush.xpose.msra.mxu0 0.0
    %296 = vmatpush.xpose.msra.mxu0 0.0
    %297 = vmatpush.xpose.msra.mxu0 0.0
    %298 = vmatpush.xpose.msra.mxu0 0.0
    %299 = vmatpush.xpose.msra.mxu0 0.0
    %300 = vmatpush.xpose.msra.mxu0 0.0
    %301 = vmatpush.xpose.msra.mxu0 0.0
    %302 = vmatpush.xpose.msra.mxu0 0.0
    %303 = vmatpush.xpose.msra.mxu0 0.0
    %304 = vmatpush.xpose.msra.mxu0 0.0
    %305 = vmatpush.xpose.msra.mxu0 0.0
    %306 = vmatpush.xpose.msra.mxu0 0.0
    %307 = vmatpush.xpose.msra.mxu0 0.0
    %308 = vmatpush.xpose.msra.mxu0 0.0
    %309 = vmatpush.xpose.msra.mxu0 0.0
    %310 = vmatpush.xpose.msra.mxu0 %v293
    %311 = vmatmul.f32.gmra.mxu0 %v291
    %v312 = vpop.f32.mrf.mxu0
    %v313 = vadd.f32 0.0, %v312
    %314 = vdwg.mxu0
    %315 = vrot.lane.b32.xlu0 %v149, 120
    %v316 = vpop.permute.xlu0 %315
    %317 = vrot.lane.b32.xlu0 %v149, 88
    %v318 = vpop.permute.xlu0 %317
    %v319 = vsel %vm155, %v316, 0
    %v321 = vsel %vm155, %v318, 0
    %323 = vmatpush.xpose.msra.mxu0 0.0
    %324 = vmatpush.xpose.msra.mxu0 0.0
    %325 = vmatpush.xpose.msra.mxu0 0.0
    %326 = vmatpush.xpose.msra.mxu0 0.0
    %327 = vmatpush.xpose.msra.mxu0 0.0
    %328 = vmatpush.xpose.msra.mxu0 0.0
    %329 = vmatpush.xpose.msra.mxu0 0.0
    %330 = vmatpush.xpose.msra.mxu0 0.0
    %331 = vmatpush.xpose.msra.mxu0 0.0
    %332 = vmatpush.xpose.msra.mxu0 0.0
    %333 = vmatpush.xpose.msra.mxu0 0.0
    %334 = vmatpush.xpose.msra.mxu0 0.0
    %335 = vmatpush.xpose.msra.mxu0 0.0
    %336 = vmatpush.xpose.msra.mxu0 0.0
    %337 = vmatpush.xpose.msra.mxu0 0.0
    %338 = vmatpush.xpose.msra.mxu0 %v321
    %339 = vmatmul.f32.gmra.mxu0 %v319
    %v340 = vpop.f32.mrf.mxu0
    %v341 = vadd.f32 0.0, %v340
    %342 = vdwg.mxu0
    %v343 = vmul.f32 %v313, 0.35355338
    %v344 = vmul.f32 %v341, 0.35355338
    %v345 = vadd.f32 %v343, %v151
    %v346 = vadd.f32 %v344, %v151
    %v347 = vsel %vm155, %v345, -inf
    %348 = vmax.xlane.f32.xlu0 %v347
    %v349 = vpop.xlane.xlu0 %348
    %v350 = vsel %vm155, %v346, -inf
    %351 = vmax.xlane.f32.xlu0 %v350
    %v352 = vpop.xlane.xlu0 %351
    %v353 = vsub.f32 %v345, %v349
    %v354 = vsub.f32 %v346, %v352
    %v355 = vmul.f32 %v353, 1.442695
    %v356 = vpow.pop %v355
    %v357 = vmul.f32 %v354, 1.442695
    %v358 = vpow.pop %v357
    %v359 = vsel %vm155, %v356, 0.0
    %360 = vadd.xlane.f32.xlu0 %v359
    %v361 = vpop.xlane.xlu0 %360
    %v362 = vsel %vm155, %v358, 0.0
    %363 = vadd.xlane.f32.xlu0 %v362
    %v364 = vpop.xlane.xlu0 %363
    %v365 = vrcp.pop %v361
    %v366 = vrcp.pop %v364
    %v367 = vmul.f32 %v356, %v365
    %v368 = vmul.f32 %v358, %v366
    %369 = vrot.lane.b32.xlu0 %v146, 56
    %v370 = vpop.permute.xlu0 %369
    %v373 = vsel %vm155, %v367, 0
    %375 = vmatpush.msra.mxu0 0.0
    %376 = vmatpush.msra.mxu0 0.0
    %377 = vmatpush.msra.mxu0 0.0
    %378 = vmatpush.msra.mxu0 0.0
    %379 = vmatpush.msra.mxu0 0.0
    %380 = vmatpush.msra.mxu0 0.0
    %381 = vmatpush.msra.mxu0 0.0
    %382 = vmatpush.msra.mxu0 0.0
    %383 = vmatpush.msra.mxu0 0.0
    %384 = vmatpush.msra.mxu0 0.0
    %385 = vmatpush.msra.mxu0 0.0
    %386 = vmatpush.msra.mxu0 0.0
    %387 = vmatpush.msra.mxu0 0.0
    %388 = vmatpush.msra.mxu0 0.0
    %389 = vmatpush.msra.mxu0 0.0
    %390 = vmatpush.msra.mxu0 %v370
    %391 = vmatmul.f32.gmra.mxu0 %v373
    %v392 = vpop.f32.mrf.mxu0
    %v393 = vadd.f32 0.0, %v392
    %394 = vdwg.mxu0
    %395 = vrot.lane.b32.xlu0 %v149, 56
    %v396 = vpop.permute.xlu0 %395
    %v399 = vsel %vm155, %v368, 0
    %401 = vmatpush.msra.mxu0 0.0
    %402 = vmatpush.msra.mxu0 0.0
    %403 = vmatpush.msra.mxu0 0.0
    %404 = vmatpush.msra.mxu0 0.0
    %405 = vmatpush.msra.mxu0 0.0
    %406 = vmatpush.msra.mxu0 0.0
    %407 = vmatpush.msra.mxu0 0.0
    %408 = vmatpush.msra.mxu0 0.0
    %409 = vmatpush.msra.mxu0 0.0
    %410 = vmatpush.msra.mxu0 0.0
    %411 = vmatpush.msra.mxu0 0.0
    %412 = vmatpush.msra.mxu0 0.0
    %413 = vmatpush.msra.mxu0 0.0
    %414 = vmatpush.msra.mxu0 0.0
    %415 = vmatpush.msra.mxu0 0.0
    %416 = vmatpush.msra.mxu0 %v396
    %417 = vmatmul.f32.gmra.mxu0 %v399
    %v418 = vpop.f32.mrf.mxu0
    %v419 = vadd.f32 0.0, %v418
    %420 = vdwg.mxu0
    %423 = vrot.lane.b32.xlu0 %v393, 8
    %v424 = vpop.permute.xlu0 %423
    %425 = vrot.lane.b32.xlu0 %v419, 8
    %v426 = vpop.permute.xlu0 %425
    %vm429 = vcmask 130112
    %430 = vst.msk [vmem:[#allocation2] sm:$0xff] %vm429, %v424
    %431 = vst.msk [vmem:[#allocation2 + $0x8] sm:$0xff] %vm429, %v426
    %432 = vrot.lane.b32.xlu0 %v146, 112
    %v433 = vpop.permute.xlu0 %432
    %434 = vrot.lane.b32.xlu0 %v146, 80
    %v435 = vpop.permute.xlu0 %434
    %v436 = vsel %vm155, %v433, 0
    %v438 = vsel %vm155, %v435, 0
    %440 = vmatpush.xpose.msra.mxu0 0.0
    %441 = vmatpush.xpose.msra.mxu0 0.0
    %442 = vmatpush.xpose.msra.mxu0 0.0
    %443 = vmatpush.xpose.msra.mxu0 0.0
    %444 = vmatpush.xpose.msra.mxu0 0.0
    %445 = vmatpush.xpose.msra.mxu0 0.0
    %446 = vmatpush.xpose.msra.mxu0 0.0
    %447 = vmatpush.xpose.msra.mxu0 0.0
    %448 = vmatpush.xpose.msra.mxu0 0.0
    %449 = vmatpush.xpose.msra.mxu0 0.0
    %450 = vmatpush.xpose.msra.mxu0 0.0
    %451 = vmatpush.xpose.msra.mxu0 0.0
    %452 = vmatpush.xpose.msra.mxu0 0.0
    %453 = vmatpush.xpose.msra.mxu0 0.0
    %454 = vmatpush.xpose.msra.mxu0 0.0
    %455 = vmatpush.xpose.msra.mxu0 %v438
    %456 = vmatmul.f32.gmra.mxu0 %v436
    %v457 = vpop.f32.mrf.mxu0
    %v458 = vadd.f32 0.0, %v457
    %459 = vdwg.mxu0
    %460 = vrot.lane.b32.xlu0 %v149, 112
    %v461 = vpop.permute.xlu0 %460
    %462 = vrot.lane.b32.xlu0 %v149, 80
    %v463 = vpop.permute.xlu0 %462
    %v464 = vsel %vm155, %v461, 0
    %v466 = vsel %vm155, %v463, 0
    %468 = vmatpush.xpose.msra.mxu0 0.0
    %469 = vmatpush.xpose.msra.mxu0 0.0
    %470 = vmatpush.xpose.msra.mxu0 0.0
    %471 = vmatpush.xpose.msra.mxu0 0.0
    %472 = vmatpush.xpose.msra.mxu0 0.0
    %473 = vmatpush.xpose.msra.mxu0 0.0
    %474 = vmatpush.xpose.msra.mxu0 0.0
    %475 = vmatpush.xpose.msra.mxu0 0.0
    %476 = vmatpush.xpose.msra.mxu0 0.0
    %477 = vmatpush.xpose.msra.mxu0 0.0
    %478 = vmatpush.xpose.msra.mxu0 0.0
    %479 = vmatpush.xpose.msra.mxu0 0.0
    %480 = vmatpush.xpose.msra.mxu0 0.0
    %481 = vmatpush.xpose.msra.mxu0 0.0
    %482 = vmatpush.xpose.msra.mxu0 0.0
    %483 = vmatpush.xpose.msra.mxu0 %v466
    %484 = vmatmul.f32.gmra.mxu0 %v464
    %v485 = vpop.f32.mrf.mxu0
    %v486 = vadd.f32 0.0, %v485
    %487 = vdwg.mxu0
    %v488 = vmul.f32 %v458, 0.35355338
    %v489 = vmul.f32 %v486, 0.35355338
    %v490 = vadd.f32 %v488, %v151
    %v491 = vadd.f32 %v489, %v151
    %v492 = vsel %vm155, %v490, -inf
    %493 = vmax.xlane.f32.xlu0 %v492
    %v494 = vpop.xlane.xlu0 %493
    %v495 = vsel %vm155, %v491, -inf
    %496 = vmax.xlane.f32.xlu0 %v495
    %v497 = vpop.xlane.xlu0 %496
    %v498 = vsub.f32 %v490, %v494
    %v499 = vsub.f32 %v491, %v497
    %v500 = vmul.f32 %v498, 1.442695
    %v501 = vpow.pop %v500
    %v502 = vmul.f32 %v499, 1.442695
    %v503 = vpow.pop %v502
    %v504 = vsel %vm155, %v501, 0.0
    %505 = vadd.xlane.f32.xlu0 %v504
    %v506 = vpop.xlane.xlu0 %505
    %v507 = vsel %vm155, %v503, 0.0
    %508 = vadd.xlane.f32.xlu0 %v507
    %v509 = vpop.xlane.xlu0 %508
    %v510 = vrcp.pop %v506
    %v511 = vrcp.pop %v509
    %v512 = vmul.f32 %v501, %v510
    %v513 = vmul.f32 %v503, %v511
    %514 = vrot.lane.b32.xlu0 %v146, 48
    %v515 = vpop.permute.xlu0 %514
    %v518 = vsel %vm155, %v512, 0
    %520 = vmatpush.msra.mxu0 0.0
    %521 = vmatpush.msra.mxu0 0.0
    %522 = vmatpush.msra.mxu0 0.0
    %523 = vmatpush.msra.mxu0 0.0
    %524 = vmatpush.msra.mxu0 0.0
    %525 = vmatpush.msra.mxu0 0.0
    %526 = vmatpush.msra.mxu0 0.0
    %527 = vmatpush.msra.mxu0 0.0
    %528 = vmatpush.msra.mxu0 0.0
    %529 = vmatpush.msra.mxu0 0.0
    %530 = vmatpush.msra.mxu0 0.0
    %531 = vmatpush.msra.mxu0 0.0
    %532 = vmatpush.msra.mxu0 0.0
    %533 = vmatpush.msra.mxu0 0.0
    %534 = vmatpush.msra.mxu0 0.0
    %535 = vmatpush.msra.mxu0 %v515
    %536 = vmatmul.f32.gmra.mxu0 %v518
    %v537 = vpop.f32.mrf.mxu0
    %v538 = vadd.f32 0.0, %v537
    %539 = vdwg.mxu0
    %540 = vrot.lane.b32.xlu0 %v149, 48
    %v541 = vpop.permute.xlu0 %540
    %v544 = vsel %vm155, %v513, 0
    %546 = vmatpush.msra.mxu0 0.0
    %547 = vmatpush.msra.mxu0 0.0
    %548 = vmatpush.msra.mxu0 0.0
    %549 = vmatpush.msra.mxu0 0.0
    %550 = vmatpush.msra.mxu0 0.0
    %551 = vmatpush.msra.mxu0 0.0
    %552 = vmatpush.msra.mxu0 0.0
    %553 = vmatpush.msra.mxu0 0.0
    %554 = vmatpush.msra.mxu0 0.0
    %555 = vmatpush.msra.mxu0 0.0
    %556 = vmatpush.msra.mxu0 0.0
    %557 = vmatpush.msra.mxu0 0.0
    %558 = vmatpush.msra.mxu0 0.0
    %559 = vmatpush.msra.mxu0 0.0
    %560 = vmatpush.msra.mxu0 0.0
    %561 = vmatpush.msra.mxu0 %v541
    %562 = vmatmul.f32.gmra.mxu0 %v544
    %v563 = vpop.f32.mrf.mxu0
    %v564 = vadd.f32 0.0, %v563
    %565 = vdwg.mxu0
    %568 = vrot.lane.b32.xlu0 %v538, 16
    %v569 = vpop.permute.xlu0 %568
    %570 = vrot.lane.b32.xlu0 %v564, 16
    %v571 = vpop.permute.xlu0 %570
    %vm574 = vcmask 195712
    %575 = vst.msk [vmem:[#allocation2] sm:$0xff] %vm574, %v569
    %576 = vst.msk [vmem:[#allocation2 + $0x8] sm:$0xff] %vm574, %v571
    %577 = vrot.lane.b32.xlu0 %v146, 104
    %v578 = vpop.permute.xlu0 %577
    %579 = vrot.lane.b32.xlu0 %v146, 72
    %v580 = vpop.permute.xlu0 %579
    %v581 = vsel %vm155, %v578, 0
    %v583 = vsel %vm155, %v580, 0
    %585 = vmatpush.xpose.msra.mxu0 0.0
    %586 = vmatpush.xpose.msra.mxu0 0.0
    %587 = vmatpush.xpose.msra.mxu0 0.0
    %588 = vmatpush.xpose.msra.mxu0 0.0
    %589 = vmatpush.xpose.msra.mxu0 0.0
    %590 = vmatpush.xpose.msra.mxu0 0.0
    %591 = vmatpush.xpose.msra.mxu0 0.0
    %592 = vmatpush.xpose.msra.mxu0 0.0
    %593 = vmatpush.xpose.msra.mxu0 0.0
    %594 = vmatpush.xpose.msra.mxu0 0.0
    %595 = vmatpush.xpose.msra.mxu0 0.0
    %596 = vmatpush.xpose.msra.mxu0 0.0
    %597 = vmatpush.xpose.msra.mxu0 0.0
    %598 = vmatpush.xpose.msra.mxu0 0.0
    %599 = vmatpush.xpose.msra.mxu0 0.0
    %600 = vmatpush.xpose.msra.mxu0 %v583
    %601 = vmatmul.f32.gmra.mxu0 %v581
    %v602 = vpop.f32.mrf.mxu0
    %v603 = vadd.f32 0.0, %v602
    %604 = vdwg.mxu0
    %605 = vrot.lane.b32.xlu0 %v149, 104
    %v606 = vpop.permute.xlu0 %605
    %607 = vrot.lane.b32.xlu0 %v149, 72
    %v608 = vpop.permute.xlu0 %607
    %v609 = vsel %vm155, %v606, 0
    %v611 = vsel %vm155, %v608, 0
    %613 = vmatpush.xpose.msra.mxu0 0.0
    %614 = vmatpush.xpose.msra.mxu0 0.0
    %615 = vmatpush.xpose.msra.mxu0 0.0
    %616 = vmatpush.xpose.msra.mxu0 0.0
    %617 = vmatpush.xpose.msra.mxu0 0.0
    %618 = vmatpush.xpose.msra.mxu0 0.0
    %619 = vmatpush.xpose.msra.mxu0 0.0
    %620 = vmatpush.xpose.msra.mxu0 0.0
    %621 = vmatpush.xpose.msra.mxu0 0.0
    %622 = vmatpush.xpose.msra.mxu0 0.0
    %623 = vmatpush.xpose.msra.mxu0 0.0
    %624 = vmatpush.xpose.msra.mxu0 0.0
    %625 = vmatpush.xpose.msra.mxu0 0.0
    %626 = vmatpush.xpose.msra.mxu0 0.0
    %627 = vmatpush.xpose.msra.mxu0 0.0
    %628 = vmatpush.xpose.msra.mxu0 %v611
    %629 = vmatmul.f32.gmra.mxu0 %v609
    %v630 = vpop.f32.mrf.mxu0
    %v631 = vadd.f32 0.0, %v630
    %632 = vdwg.mxu0
    %v633 = vmul.f32 %v603, 0.35355338
    %v634 = vmul.f32 %v631, 0.35355338
    %v635 = vadd.f32 %v633, %v151
    %v636 = vadd.f32 %v634, %v151
    %v637 = vsel %vm155, %v635, -inf
    %638 = vmax.xlane.f32.xlu0 %v637
    %v639 = vpop.xlane.xlu0 %638
    %v640 = vsel %vm155, %v636, -inf
    %641 = vmax.xlane.f32.xlu0 %v640
    %v642 = vpop.xlane.xlu0 %641
    %v643 = vsub.f32 %v635, %v639
    %v644 = vsub.f32 %v636, %v642
    %v645 = vmul.f32 %v643, 1.442695
    %v646 = vpow.pop %v645
    %v647 = vmul.f32 %v644, 1.442695
    %v648 = vpow.pop %v647
    %v649 = vsel %vm155, %v646, 0.0
    %650 = vadd.xlane.f32.xlu0 %v649
    %v651 = vpop.xlane.xlu0 %650
    %v652 = vsel %vm155, %v648, 0.0
    %653 = vadd.xlane.f32.xlu0 %v652
    %v654 = vpop.xlane.xlu0 %653
    %v655 = vrcp.pop %v651
    %v656 = vrcp.pop %v654
    %v657 = vmul.f32 %v646, %v655
    %v658 = vmul.f32 %v648, %v656
    %659 = vrot.lane.b32.xlu0 %v146, 40
    %v660 = vpop.permute.xlu0 %659
    %v663 = vsel %vm155, %v657, 0
    %665 = vmatpush.msra.mxu0 0.0
    %666 = vmatpush.msra.mxu0 0.0
    %667 = vmatpush.msra.mxu0 0.0
    %668 = vmatpush.msra.mxu0 0.0
    %669 = vmatpush.msra.mxu0 0.0
    %670 = vmatpush.msra.mxu0 0.0
    %671 = vmatpush.msra.mxu0 0.0
    %672 = vmatpush.msra.mxu0 0.0
    %673 = vmatpush.msra.mxu0 0.0
    %674 = vmatpush.msra.mxu0 0.0
    %675 = vmatpush.msra.mxu0 0.0
    %676 = vmatpush.msra.mxu0 0.0
    %677 = vmatpush.msra.mxu0 0.0
    %678 = vmatpush.msra.mxu0 0.0
    %679 = vmatpush.msra.mxu0 0.0
    %680 = vmatpush.msra.mxu0 %v660
    %681 = vmatmul.f32.gmra.mxu0 %v663
    %v682 = vpop.f32.mrf.mxu0
    %v683 = vadd.f32 0.0, %v682
    %684 = vdwg.mxu0
    %685 = vrot.lane.b32.xlu0 %v149, 40
    %v686 = vpop.permute.xlu0 %685
    %v689 = vsel %vm155, %v658, 0
    %691 = vmatpush.msra.mxu0 0.0
    %692 = vmatpush.msra.mxu0 0.0
    %693 = vmatpush.msra.mxu0 0.0
    %694 = vmatpush.msra.mxu0 0.0
    %695 = vmatpush.msra.mxu0 0.0
    %696 = vmatpush.msra.mxu0 0.0
    %697 = vmatpush.msra.mxu0 0.0
    %698 = vmatpush.msra.mxu0 0.0
    %699 = vmatpush.msra.mxu0 0.0
    %700 = vmatpush.msra.mxu0 0.0
    %701 = vmatpush.msra.mxu0 0.0
    %702 = vmatpush.msra.mxu0 0.0
    %703 = vmatpush.msra.mxu0 0.0
    %704 = vmatpush.msra.mxu0 0.0
    %705 = vmatpush.msra.mxu0 0.0
    %706 = vmatpush.msra.mxu0 %v686
    %707 = vmatmul.f32.gmra.mxu0 %v689
    %v708 = vpop.f32.mrf.mxu0
    %v709 = vadd.f32 0.0, %v708
    %710 = vdwg.mxu0
    %713 = vrot.lane.b32.xlu0 %v683, 24
    %v714 = vpop.permute.xlu0 %713
    %715 = vrot.lane.b32.xlu0 %v709, 24
    %v716 = vpop.permute.xlu0 %715
    %vm719 = vcmask 261312
    %720 = vst.msk [vmem:[#allocation2] sm:$0xff] %vm719, %v714
    %721 = vst.msk [vmem:[#allocation2 + $0x8] sm:$0xff] %vm719, %v716
    %v722 = vld [vmem:[#allocation2] sm:$0xff]
    %v723 = vld [vmem:[#allocation2 + $0x8] sm:$0xff]
    %v724 = vld [vmem:[%s6] sm:$0xff]
    %v725 = vld [vmem:[%s6 + $0x8] sm:$0xff]
    %v726 = vld [vmem:[%s6 + $0x10] sm:$0xff]
    %v727 = vld [vmem:[%s6 + $0x18] sm:$0xff]
    %v728 = vld [vmem:[%s7] sm:$0x1]
    %v730 = vperm.slane %v728, 0
    %v733 = vsel %vm52, %v722, 0
    %v736 = vsel %vm52, %v723, 0
    %738 = vmatpush.msra.mxu0 0.0
    %739 = vmatpush.msra.mxu0 0.0
    %740 = vmatpush.msra.mxu0 0.0
    %741 = vmatpush.msra.mxu0 0.0
    %742 = vmatpush.msra.mxu0 0.0
    %743 = vmatpush.msra.mxu0 0.0
    %744 = vmatpush.msra.mxu0 0.0
    %745 = vmatpush.msra.mxu0 0.0
    %746 = vmatpush.msra.mxu0 0.0
    %747 = vmatpush.msra.mxu0 0.0
    %748 = vmatpush.msra.mxu0 0.0
    %749 = vmatpush.msra.mxu0 0.0
    %750 = vmatpush.msra.mxu0 %v727
    %751 = vmatpush.msra.mxu0 %v726
    %752 = vmatpush.msra.mxu0 %v725
    %753 = vmatpush.msra.mxu0 %v724
    %754 = vmatmul.f32.gmra.mxu0 %v733
    %v755 = vpop.f32.mrf.mxu0
    %v756 = vadd.f32 %v730, %v755
    %757 = vmatmul.f32.gmra.mxu0 %v736
    %v758 = vpop.f32.mrf.mxu0
    %v759 = vadd.f32 %v730, %v758
    %760 = vdwg.mxu0
    %v761 = vadd.f32 %v48, %v756
    %v762 = vadd.f32 %v49, %v759
    %v763 = vld [vmem:[%s8] sm:$0x1]
    %v764 = vld [vmem:[%s9] sm:$0x1]
    %v765 = vsel %vm52, %v761, 0.0
    %766 = vadd.xlane.f32.xlu0 %v765
    %v767 = vpop.xlane.xlu0 %766
    %v768 = vsel %vm52, %v762, 0.0
    %769 = vadd.xlane.f32.xlu0 %v768
    %v770 = vpop.xlane.xlu0 %769
    %v771 = vmul.f32 %v767, %v65
    %v772 = vmul.f32 %v770, %v65
    %v773 = vsub.f32 %v761, %v771
    %v774 = vsub.f32 %v762, %v772
    %v775 = vmul.f32 %v773, %v773
    %v776 = vmul.f32 %v774, %v774
    %v777 = vsel %vm52, %v775, 0.0
    %778 = vadd.xlane.f32.xlu0 %v777
    %v779 = vpop.xlane.xlu0 %778
    %v780 = vsel %vm52, %v776, 0.0
    %781 = vadd.xlane.f32.xlu0 %v780
    %v782 = vpop.xlane.xlu0 %781
    %v783 = vmul.f32 %v779, %v65
    %v784 = vmul.f32 %v782, %v65
    %v785 = vadd.f32 %v783, 1e-05
    %v786 = vadd.f32 %v784, 1e-05
    %v787 = vrsqrt.pop %v785
    %v788 = vmul.f32 %v787, %v785
    %v789 = vmul.f32 %v788, %v787
    %v790 = vmul.f32 0.5, %v789
    %v791 = vsub.f32 1.5, %v790
    %v792 = vmul.f32 %v787, %v791
    %vm793 = vweird.f32 %v785
    %vm794 = vweird.f32 %v787
    %vm795 = vmor %vm793, %vm794
    %v796 = vsel %vm795, %v787, %v792
    %v797 = vrsqrt.pop %v786
    %v798 = vmul.f32 %v797, %v786
    %v799 = vmul.f32 %v798, %v797
    %v800 = vmul.f32 0.5, %v799
    %v801 = vsub.f32 1.5, %v800
    %v802 = vmul.f32 %v797, %v801
    %vm803 = vweird.f32 %v786
    %vm804 = vweird.f32 %v797
    %vm805 = vmor %vm803, %vm804
    %v806 = vsel %vm805, %v797, %v802
    %v807 = vmul.f32 %v773, %v796
    %v808 = vmul.f32 %v774, %v806
    %v810 = vperm.slane %v763, 0
    %v812 = vmul.f32 %v807, %v810
    %v813 = vmul.f32 %v808, %v810
    %v815 = vperm.slane %v764, 0
    %v817 = vadd.f32 %v812, %v815
    %v818 = vadd.f32 %v813, %v815
    %v819 = vld [vmem:[%s10] sm:$0xff]
    %v820 = vld [vmem:[%s10 + $0x8] sm:$0xff]
    %v821 = vld [vmem:[%s10 + $0x10] sm:$0xff]
    %v822 = vld [vmem:[%s10 + $0x18] sm:$0xff]
    %v823 = vld [vmem:[%s11] sm:$0x1]
    %v825 = vperm.slane %v823, 0
    %v828 = vsel %vm52, %v817, 0
    %v831 = vsel %vm52, %v818, 0
    %833 = vmatpush.msra.mxu0 0.0
    %834 = vmatpush.msra.mxu0 0.0
    %835 = vmatpush.msra.mxu0 0.0
    %836 = vmatpush.msra.mxu0 0.0
    %837 = vmatpush.msra.mxu0 0.0
    %838 = vmatpush.msra.mxu0 0.0
    %839 = vmatpush.msra.mxu0 0.0
    %840 = vmatpush.msra.mxu0 0.0
    %841 = vmatpush.msra.mxu0 0.0
    %842 = vmatpush.msra.mxu0 0.0
    %843 = vmatpush.msra.mxu0 0.0
    %844 = vmatpush.msra.mxu0 0.0
    %845 = vmatpush.msra.mxu0 %v822
    %846 = vmatpush.msra.mxu0 %v821
    %847 = vmatpush.msra.mxu0 %v820
    %848 = vmatpush.msra.mxu0 %v819
    %849 = vmatmul.f32.gmra.mxu0 %v828
    %v850 = vpop.f32.mrf.mxu0
    %v851 = vadd.f32 %v825, %v850
    %852 = vmatmul.f32.gmra.mxu0 %v831
    %v853 = vpop.f32.mrf.mxu0
    %v854 = vadd.f32 %v825, %v853
    %855 = vdwg.mxu0
    %v856 = vmul.f32 %v851, 0.5
    %v857 = vmul.f32 %v854, 0.5
    %v858 = vmul.f32 %v851, %v851
    %v859 = vmul.f32 %v854, %v854
    %v860 = vmul.f32 %v858, %v851
    %v861 = vmul.f32 %v859, %v854
    %v862 = vmul.f32 %v860, 0.044715
    %v863 = vmul.f32 %v861, 0.044715
    %v864 = vadd.f32 %v851, %v862
    %v865 = vadd.f32 %v854, %v863
    %v866 = vmul.f32 %v864, 0.7978846
    %v867 = vmul.f32 %v865, 0.7978846
    %v868 = vtanh.pop %v866
    %v869 = vtanh.pop %v867
    %v870 = vadd.f32 %v868, 1.0
    %v871 = vadd.f32 %v869, 1.0
    %v872 = vmul.f32 %v856, %v870
    %v873 = vmul.f32 %v857, %v871
    %v874 = vld [vmem:[%s12] sm:$0xff]
    %v875 = vld [vmem:[%s12 + $0x8] sm:$0xff]
    %v876 = vld [vmem:[%s12 + $0x10] sm:$0xff]
    %v877 = vld [vmem:[%s12 + $0x18] sm:$0xff]
    %v878 = vld [vmem:[%s12 + $0x20] sm:$0xff]
    %v879 = vld [vmem:[%s12 + $0x28] sm:$0xff]
    %v880 = vld [vmem:[%s12 + $0x30] sm:$0xff]
    %v881 = vld [vmem:[%s12 + $0x38] sm:$0xff]
    %v882 = vld [vmem:[%s12 + $0x40] sm:$0xff]
    %v883 = vld [vmem:[%s12 + $0x48] sm:$0xff]
    %v884 = vld [vmem:[%s12 + $0x50] sm:$0xff]
    %v885 = vld [vmem:[%s12 + $0x58] sm:$0xff]
    %v886 = vld [vmem:[%s12 + $0x60] sm:$0xff]
    %v887 = vld [vmem:[%s12 + $0x68] sm:$0xff]
    %v888 = vld [vmem:[%s12 + $0x70] sm:$0xff]
    %v889 = vld [vmem:[%s12 + $0x78] sm:$0xff]
    %v890 = vld [vmem:[%s13] sm:$0x1]
    %v892 = vperm.slane %v890, 0
    %894 = vmatpush.msra.mxu0 %v889
    %895 = vmatpush.msra.mxu0 %v888
    %896 = vmatpush.msra.mxu0 %v887
    %897 = vmatpush.msra.mxu0 %v886
    %898 = vmatpush.msra.mxu0 %v885
    %899 = vmatpush.msra.mxu0 %v884
    %900 = vmatpush.msra.mxu0 %v883
    %901 = vmatpush.msra.mxu0 %v882
    %902 = vmatpush.msra.mxu0 %v881
    %903 = vmatpush.msra.mxu0 %v880
    %904 = vmatpush.msra.mxu0 %v879
    %905 = vmatpush.msra.mxu0 %v878
    %906 = vmatpush.msra.mxu0 %v877
    %907 = vmatpush.msra.mxu0 %v876
    %908 = vmatpush.msra.mxu0 %v875
    %909 = vmatpush.msra.mxu0 %v874
    %910 = vmatmul.f32.gmra.mxu0 %v872
    %v911 = vpop.f32.mrf.mxu0
    %v912 = vadd.f32 %v892, %v911
    %913 = vmatmul.f32.gmra.mxu0 %v873
    %v914 = vpop.f32.mrf.mxu0
    %v915 = vadd.f32 %v892, %v914
    %916 = vdwg.mxu0
    %v917 = vadd.f32 %v761, %v912
    %v918 = vadd.f32 %v762, %v915
    %919 = vst.msk [vmem:[#allocation3] sm:$0xff] %vm52, %v917
    %920 = vst.msk [vmem:[#allocation3 + $0x8] sm:$0xff] %vm52, %v918
    // Predicated region
    $region58: #{tpu_custom_call.1} parent=1 // pred_check
      _
    $region59: #{tpu_custom_call.1} parent=1 // pred_check_branch
      %922 = sbr.rel (0) target = $region61
    $region60: #{tpu_custom_call.1} parent=1 // pred_region
      %924 = vsyncadd [#allocation4], 0
      %s925 = sshll.u32 [#allocation3], 4
      %s926 = int_to_ptr.vmem [resolvable:$true] %s925
      %s927 = sshll.u32 %s14, 4
      %s928 = int_to_ptr.hbm [resolvable:$true] %s927
      %933 = dma.vmem_to_hbm [thread:$0]  %s926, 256, %s928, [#allocation4], 128, 128, 8
    $region61: #{tpu_custom_call.1} parent=1 // pred_fallthru
      _
    // Predicated region
    $region62: #{tpu_custom_call.1} parent=1 // pred_check
      _
    $region63: #{tpu_custom_call.1} parent=1 // pred_check_branch
      %935 = sbr.rel (0) target = $region65
    $region64: #{tpu_custom_call.1} parent=1 // pred_region
      %937 = dma.done [#allocation4], 256
    $region65: #{tpu_custom_call.1} parent=1 // pred_fallthru
      _
    %938 = vsyncpa [#allocation4], 1

</llo_original>
